<compile_context>
chip_gen: v7x
topology: tpu7x:2x2x1
jax: 0.10.0
libtpu: 0.0.40
codegen_flags: <defaults>
</compile_context>

<pallas_src>
import jax
import jax.numpy as jnp
from jax.experimental import pallas as pl
from jax.experimental.pallas import tpu as pltpu

EMBED_DIM = 32          # small synthetic embed_dim (torch default 768)
HIDDEN_DIM = 64         # small synthetic hidden_dim (torch default 1024)
NUM_NUMERICAL = 10      # fixed by nn.Linear(10, embed_dim // 2)
NUM_PAD = 16            # numerical K padded to a sublane multiple
OUT_LANES = 128         # lane-dense output slab width
LN_EPS = 1e-5           # nn.LayerNorm default eps

# Set to jnp.bfloat16 to apply the review's bf16-MXU-operand item (fewer MXU
# passes, half the operand bytes) -- changes numerics vs the fp32 torch
# module, so only flip behind a tolerance test.
MATMUL_DTYPE = jnp.float32


def _round_up(x, m):
    return ((x + m - 1) // m) * m


def _mm(a, b):
    return jnp.dot(a.astype(MATMUL_DTYPE), b.astype(MATMUL_DTYPE),
                   preferred_element_type=jnp.float32)


def _gelu(x):
    # tanh-approx GELU: lands on the EUP slot instead of a long VPU erf
    # polynomial (review item 5); <~3e-3 abs deviation from torch's erf GELU.
    return jax.nn.gelu(x, approximate=True)


def _layernorm(x, gamma, beta):
    mu = jnp.mean(x, axis=-1, keepdims=True)
    var = jnp.mean(jnp.square(x - mu), axis=-1, keepdims=True)
    return (x - mu) * jax.lax.rsqrt(var + LN_EPS) * gamma + beta


def _make_kernel(cat_scales):
    """Fused kernel.  `cat_scales` is a static tuple of per-position 1/L
    mean-pooling scales for the (already offset) categorical index columns."""

    def kernel(*refs):
        ids_ref, mask_ref = refs[0], refs[1]
        rest = refs[2:]
        if cat_scales:
            cat_ref, rest = rest[0], rest[1:]
        (num_ref, ftab_ref, nw1_ref, nb1_ref, nw2f_ref, fb1f_ref,
         fw2_ref, fb2_ref, fw3_ref, fb3_ref, fg_ref, fbt_ref,
         pw1_ref, pb1_ref, pw2_ref, pb2_ref, pg_ref, pbt_ref,
         out_ref) = rest

        bm, seq = ids_ref.shape
        ktot = ftab_ref.shape[0]

        # single minimal-shape compare iota, hoisted; text + categorical share
        # the folded row space
        iota_k = jax.lax.broadcasted_iota(jnp.int32, (1, ktot), 1)

        ids = ids_ref[...]                                  # (bm, S) int32
        mask = mask_ref[...]                                # (bm, S) f32

        # ---- encode_text: per-position 2-D one-hot accumulation ------------
        # only a (bm, ktot) pooled-weight matrix is ever live
        w = (ids[:, 0:1] == iota_k).astype(jnp.float32) * mask[:, 0:1]
        for s in range(1, seq):
            w = w + (ids[:, s:s + 1] == iota_k).astype(jnp.float32) * mask[:, s:s + 1]
        sum_mask = jnp.maximum(jnp.sum(mask, axis=1, keepdims=True), 1e-9)
        w = w * (1.0 / sum_mask)            # categorical lanes are still zero

        # ---- encode_categorical: mean-pooled one-hot rows -------------------
        if cat_scales:
            cat = cat_ref[...]                              # (bm, sum(L)) int32
            for p, sc in enumerate(cat_scales):
                w = w + (cat[:, p:p + 1] == iota_k).astype(jnp.float32) * sc

        # ---- numerical_projection first layer (2nd layer folded into fusion)
        h_num = _gelu(_mm(num_ref[...], nw1_ref[...]) + nb1_ref[...])

        # ---- fusion layer 1: ONE lane-dense-K matmul + folded numerical branch
        acc = _mm(w, ftab_ref[...]) + fb1f_ref[...] + _mm(h_num, nw2f_ref[...])

        # ---- rest of fusion_layers: GELU-Lin-GELU-Lin-LayerNorm --------------
        h = _gelu(acc)
        h = _gelu(_mm(h, fw2_ref[...]) + fb2_ref[...])
        h = _mm(h, fw3_ref[...]) + fb3_ref[...]
        show = _layernorm(h, fg_ref[...], fbt_ref[...])

        # ---- projection_head: Lin-GELU-Lin-LayerNorm -------------------------
        h = _gelu(_mm(show, pw1_ref[...]) + pb1_ref[...])
        h = _mm(h, pw2_ref[...]) + pb2_ref[...]
        proj = _layernorm(h, pg_ref[...], pbt_ref[...])

        # ---- single lane-dense output slab -----------------------------------
        pad = OUT_LANES - (show.shape[1] + proj.shape[1])
        out_ref[...] = jnp.concatenate(
            [show, proj, jnp.zeros((bm, pad), jnp.float32)], axis=1)

    return kernel


def tv_encoder_apply(params, input_ids, attention_mask, categorical_features,
                     numerical_features):
    """Whole TVEncoder forward in one pallas_call."""
    E, H = EMBED_DIM, HIDDEN_DIM
    e2, e4 = E // 2, E // 4

    B, S = input_ids.shape
    ids = input_ids.astype(jnp.int32)
    mask = attention_mask.astype(jnp.float32)
    vt = params["text_embedding"].shape[0]

    # categorical features, dict order (matches torch encode_categorical)
    cat_names = [n for n in categorical_features if n in params["cat_embeddings"]]
    n_cat = len(cat_names)

    # ---- split fw1 row-wise: [text | cat_0..cat_{n-1} | num] ----------------
    fusion_in = E + n_cat * e4 + e2
    fw1 = params["fw1"]
    assert fw1.shape[0] == fusion_in, (
        f"fw1 in-dim {fw1.shape[0]} != runtime concat width {fusion_in}")
    fw1_text = fw1[:E]
    fw1_cats = [fw1[E + i * e4: E + (i + 1) * e4] for i in range(n_cat)]
    fw1_num = fw1[E + n_cat * e4:]

    # ---- pre-fold consecutive linear layers (exact up to fp32 reassoc.) -----
    folded_blocks = [params["text_embedding"] @ fw1_text]           # (vt, H)
    cat_offsets, base = [], vt
    for i, name in enumerate(cat_names):
        tab = params["cat_embeddings"][name]
        folded_blocks.append(tab @ fw1_cats[i])                     # (Vc_i, H)
        cat_offsets.append(base)
        base += tab.shape[0]
    ktot = base
    ktot_pad = _round_up(ktot, 128)       # lane-dense K for the pooled matmul
    folded_table = jnp.concatenate(folded_blocks, axis=0)
    folded_table = jnp.pad(folded_table, ((0, ktot_pad - ktot), (0, 0)))

    nw2f = params["nw2"] @ fw1_num                                   # (e2, H)
    fb1f = params["fb1"] + params["nb2"] @ fw1_num                   # (1, H)

    # categorical index columns, offset into the folded row space; 1/L scales
    # are static constants baked into the kernel
    cat_cols, cat_scales = [], []
    for i, name in enumerate(cat_names):
        v = categorical_features[name]
        v = v[:, None] if v.ndim == 1 else v
        L = v.shape[1]
        cat_cols.append(v.astype(jnp.int32) + cat_offsets[i])
        cat_scales.extend([1.0 / L] * L)
    cat_all = jnp.concatenate(cat_cols, axis=1) if cat_cols else None
    cat_scales = tuple(cat_scales)

    # numerical K padded 10 -> 16 (sublane multiple); zero pad keeps math exact
    kn = numerical_features.shape[1]
    num = jnp.pad(numerical_features.astype(jnp.float32),
                  ((0, 0), (0, NUM_PAD - kn)))
    nw1 = jnp.pad(params["nw1"], ((0, NUM_PAD - kn), (0, 0)))

    # ---- batch tiling: >= 2 grid steps so both v7x TensorCores get work -----
    BM = min(512, _round_up(max(B // 2, 1), 8))
    B_pad = _round_up(max(B, 2 * BM), BM)
    grid = (B_pad // BM,)

    def pad_b(x):
        return x if B_pad == B else jnp.pad(
            x, ((0, B_pad - B),) + ((0, 0),) * (x.ndim - 1))

    acts = [pad_b(ids), pad_b(mask)]
    if cat_all is not None:
        acts.append(pad_b(cat_all))
    acts.append(pad_b(num))

    weights = [folded_table, nw1, params["nb1"], nw2f, fb1f,
               params["fw2"], params["fb2"], params["fw3"], params["fb3"],
               params["fg"], params["fbt"],
               params["pw1"], params["pb1"], params["pw2"], params["pb2"],
               params["pg"], params["pbt"]]
    # TODO(synk): at production sizes (30-50K vocab x 768 embed) the folded
    # tables exceed VMEM (esp. v7x 64 MiB); switch the gather to scalar-
    # prefetch row DMA (PrefetchScalarGridSpec / make_async_copy from pl.ANY)
    # instead of VMEM-resident one-hot matmuls.

    in_specs = (
        [pl.BlockSpec((BM, x.shape[1]), lambda i: (i, 0)) for x in acts]
        # weights: whole-array VMEM residence -- no per-step re-fetch and no
        # second (double-buffer) copy
        + [pl.BlockSpec(memory_space=pltpu.MemorySpace.VMEM)] * len(weights))
    out_spec = pl.BlockSpec((BM, OUT_LANES), lambda i: (i, 0))

    # advisory cost estimate
    flops = 2 * B_pad * (ktot_pad * H + NUM_PAD * e2 + e2 * H
                         + H * H + H * E + E * H + H * e2)
    transcendentals = B_pad * (e2 + 3 * H + 4)
    bytes_accessed = (sum(int(x.size) * x.dtype.itemsize for x in acts)
                      + sum(int(w.size) * w.dtype.itemsize for w in weights)
                      + B_pad * OUT_LANES * 4)

    out = pl.pallas_call(
        _make_kernel(cat_scales),
        out_shape=jax.ShapeDtypeStruct((B_pad, OUT_LANES), jnp.float32),
        grid=grid,
        in_specs=in_specs,
        out_specs=out_spec,
        compiler_params=pltpu.CompilerParams(
            dimension_semantics=("parallel",)),
        cost_estimate=pl.CostEstimate(
            flops=flops, transcendentals=transcendentals,
            bytes_accessed=bytes_accessed),
    )(*acts, *weights)

    return {"show_embedding": out[:B, :E],
            "projected_embedding": out[:B, E:E + e2]}


def tv_encoder_reference(params, input_ids, attention_mask,
                         categorical_features, numerical_features):
    """Pure-JAX reference mirroring the torch module (eval mode) with unfolded
    weights -- self-check for the wrapper-side folding + in-kernel pooling."""
    emb = params["text_embedding"][input_ids]                       # (B,S,E)
    m = attention_mask.astype(jnp.float32)[:, :, None]
    text = jnp.sum(emb * m, axis=1) / jnp.maximum(jnp.sum(m, axis=1), 1e-9)

    cats = []
    for name, v in categorical_features.items():
        if name in params["cat_embeddings"]:
            e = params["cat_embeddings"][name][v]
            if e.ndim == 3:
                e = e.mean(axis=1)
            cats.append(e)

    h = _gelu(numerical_features.astype(jnp.float32) @ params["nw1"] + params["nb1"])
    numf = h @ params["nw2"] + params["nb2"]

    fused = jnp.concatenate([text] + cats + [numf], axis=1)
    h = _gelu(fused @ params["fw1"] + params["fb1"])
    h = _gelu(h @ params["fw2"] + params["fb2"])
    h = h @ params["fw3"] + params["fb3"]
    show = _layernorm(h, params["fg"], params["fbt"])

    h = _gelu(show @ params["pw1"] + params["pb1"])
    h = h @ params["pw2"] + params["pb2"]
    proj = _layernorm(h, params["pg"], params["pbt"])
    return show, proj


def init_params(key, vocab_sizes, embed_dim=EMBED_DIM, hidden_dim=HIDDEN_DIM):
    keys = iter(jax.random.split(key, 64))

    def w(shape, scale=0.02):
        return jax.random.normal(next(keys), shape, jnp.float32) * scale

    e2 = embed_dim // 2
    e4 = embed_dim // 4

    params = {}
    params["text_embedding"] = w((vocab_sizes["text_vocab"], embed_dim))

    cat = {}
    for name, vs in vocab_sizes.items():
        if name != "text_vocab":
            table = w((vs, e4))
            table = table.at[0].set(0.0)      # padding_idx=0 row is zero
            cat[name] = table
    params["cat_embeddings"] = cat

    n_cat = len(cat)
    fusion_in = embed_dim + n_cat * e4 + e2

    # numerical_projection
    params["nw1"], params["nb1"] = w((NUM_NUMERICAL, e2)), w((1, e2))
    params["nw2"], params["nb2"] = w((e2, e2)), w((1, e2))
    # fusion_layers
    params["fw1"], params["fb1"] = w((fusion_in, hidden_dim)), w((1, hidden_dim))
    params["fw2"], params["fb2"] = w((hidden_dim, hidden_dim)), w((1, hidden_dim))
    params["fw3"], params["fb3"] = w((hidden_dim, embed_dim)), w((1, embed_dim))
    params["fg"] = jnp.ones((1, embed_dim), jnp.float32)
    params["fbt"] = jnp.zeros((1, embed_dim), jnp.float32)
    # projection_head
    params["pw1"], params["pb1"] = w((embed_dim, hidden_dim)), w((1, hidden_dim))
    params["pw2"], params["pb2"] = w((hidden_dim, e2)), w((1, e2))
    params["pg"] = jnp.ones((1, e2), jnp.float32)
    params["pbt"] = jnp.zeros((1, e2), jnp.float32)
    return params


if __name__ == "__main__":
    key = jax.random.PRNGKey(0)
    pkey, dkey = jax.random.split(key)

    vocab_sizes = {"text_vocab": 100, "genre": 16, "network": 12}
    params = init_params(pkey, vocab_sizes)

    B, S, L = 8, 8, 3
    k1, k2, k3, k4, k5 = jax.random.split(dkey, 5)
    input_ids = jax.random.randint(k1, (B, S), 0, vocab_sizes["text_vocab"])
    attention_mask = (jax.random.uniform(k2, (B, S)) > 0.2).astype(jnp.int32)
    genre = jax.random.randint(k3, (B, L), 0, vocab_sizes["genre"])    # (B,L) -> mean-pooled
    network = jax.random.randint(k4, (B,), 0, vocab_sizes["network"])  # (B,)
    numerical = jax.random.normal(k5, (B, NUM_NUMERICAL), jnp.float32)
    cat_feats = {"genre": genre, "network": network}

    apply_fn = jax.jit(tv_encoder_apply)
    out = apply_fn(params, input_ids, attention_mask, cat_feats, numerical)
    out = jax.block_until_ready(out)

    assert out["show_embedding"].shape == (B, EMBED_DIM)
    assert out["projected_embedding"].shape == (B, EMBED_DIM // 2)
    assert bool(jnp.all(jnp.isfinite(out["show_embedding"])))
    assert bool(jnp.all(jnp.isfinite(out["projected_embedding"])))

    # self-consistency check against a pure-JAX reference with unfolded weights
    ref_show, ref_proj = tv_encoder_reference(params, input_ids, attention_mask,
                                              cat_feats, numerical)
    assert float(jnp.max(jnp.abs(out["show_embedding"] - ref_show))) < 5e-2
    assert float(jnp.max(jnp.abs(out["projected_embedding"] - ref_proj))) < 5e-2

    print("KERNEL_OK")
</pallas_src>

<mosaic_0001>
module attributes {stable_mosaic.version = 11 : i64} {
  func.func @kernel(%arg0: i32, %arg1: memref<8x8xi32, #tpu.memory_space<vmem>>, %arg2: memref<8x8xf32, #tpu.memory_space<vmem>>, %arg3: memref<8x4xi32, #tpu.memory_space<vmem>>, %arg4: memref<8x16xf32, #tpu.memory_space<vmem>>, %arg5: memref<128x64xf32, #tpu.memory_space<vmem>>, %arg6: memref<16x16xf32, #tpu.memory_space<vmem>>, %arg7: memref<1x16xf32, #tpu.memory_space<vmem>>, %arg8: memref<16x64xf32, #tpu.memory_space<vmem>>, %arg9: memref<1x64xf32, #tpu.memory_space<vmem>>, %arg10: memref<64x64xf32, #tpu.memory_space<vmem>>, %arg11: memref<1x64xf32, #tpu.memory_space<vmem>>, %arg12: memref<64x32xf32, #tpu.memory_space<vmem>>, %arg13: memref<1x32xf32, #tpu.memory_space<vmem>>, %arg14: memref<1x32xf32, #tpu.memory_space<vmem>>, %arg15: memref<1x32xf32, #tpu.memory_space<vmem>>, %arg16: memref<32x64xf32, #tpu.memory_space<vmem>>, %arg17: memref<1x64xf32, #tpu.memory_space<vmem>>, %arg18: memref<64x16xf32, #tpu.memory_space<vmem>>, %arg19: memref<1x16xf32, #tpu.memory_space<vmem>>, %arg20: memref<1x16xf32, #tpu.memory_space<vmem>>, %arg21: memref<1x16xf32, #tpu.memory_space<vmem>>, %arg22: memref<8x128xf32, #tpu.memory_space<vmem>>) attributes {dimension_semantics = [#tpu.dimension_semantics<parallel>], iteration_bounds = array<i64: 2>, scalar_prefetch = 0 : i64, scratch_operands = 0 : i64, tpu.core_type = #tpu.core_type<tc>, window_params = [{transform_indices = @transform_0, window_bounds = array<i64: 8, 8>}, {transform_indices = @transform_1, window_bounds = array<i64: 8, 8>}, {transform_indices = @transform_2, window_bounds = array<i64: 8, 4>}, {transform_indices = @transform_3, window_bounds = array<i64: 8, 16>}, {pipeline_mode = #tpu.pipeline_mode<synchronous>, transform_indices = @transform_4, window_bounds = array<i64: 128, 64>}, {pipeline_mode = #tpu.pipeline_mode<synchronous>, transform_indices = @transform_5, window_bounds = array<i64: 16, 16>}, {pipeline_mode = #tpu.pipeline_mode<synchronous>, transform_indices = @transform_6, window_bounds = array<i64: 1, 16>}, {pipeline_mode = #tpu.pipeline_mode<synchronous>, transform_indices = @transform_7, window_bounds = array<i64: 16, 64>}, {pipeline_mode = #tpu.pipeline_mode<synchronous>, transform_indices = @transform_8, window_bounds = array<i64: 1, 64>}, {pipeline_mode = #tpu.pipeline_mode<synchronous>, transform_indices = @transform_9, window_bounds = array<i64: 64, 64>}, {pipeline_mode = #tpu.pipeline_mode<synchronous>, transform_indices = @transform_10, window_bounds = array<i64: 1, 64>}, {pipeline_mode = #tpu.pipeline_mode<synchronous>, transform_indices = @transform_11, window_bounds = array<i64: 64, 32>}, {pipeline_mode = #tpu.pipeline_mode<synchronous>, transform_indices = @transform_12, window_bounds = array<i64: 1, 32>}, {pipeline_mode = #tpu.pipeline_mode<synchronous>, transform_indices = @transform_13, window_bounds = array<i64: 1, 32>}, {pipeline_mode = #tpu.pipeline_mode<synchronous>, transform_indices = @transform_14, window_bounds = array<i64: 1, 32>}, {pipeline_mode = #tpu.pipeline_mode<synchronous>, transform_indices = @transform_15, window_bounds = array<i64: 32, 64>}, {pipeline_mode = #tpu.pipeline_mode<synchronous>, transform_indices = @transform_16, window_bounds = array<i64: 1, 64>}, {pipeline_mode = #tpu.pipeline_mode<synchronous>, transform_indices = @transform_17, window_bounds = array<i64: 64, 16>}, {pipeline_mode = #tpu.pipeline_mode<synchronous>, transform_indices = @transform_18, window_bounds = array<i64: 1, 16>}, {pipeline_mode = #tpu.pipeline_mode<synchronous>, transform_indices = @transform_19, window_bounds = array<i64: 1, 16>}, {pipeline_mode = #tpu.pipeline_mode<synchronous>, transform_indices = @transform_20, window_bounds = array<i64: 1, 16>}, {transform_indices = @transform_21, window_bounds = array<i64: 8, 128>}]} {
    %0 = tpu.iota {dimensions = array<i32: 1>} : vector<1x128xi32>
    %c0 = arith.constant 0 : index
    %c0_0 = arith.constant 0 : index
    %1 = vector.load %arg1[%c0, %c0_0] : memref<8x8xi32, #tpu.memory_space<vmem>>, vector<8x8xi32>
    %c0_1 = arith.constant 0 : index
    %c0_2 = arith.constant 0 : index
    %2 = vector.load %arg2[%c0_1, %c0_2] : memref<8x8xf32, #tpu.memory_space<vmem>>, vector<8x8xf32>
    %3 = vector.extract_strided_slice %1 {offsets = [0, 0], sizes = [8, 1], strides = [1, 1]} : vector<8x8xi32> to vector<8x1xi32>
    %4 = vector.broadcast %3 : vector<8x1xi32> to vector<8x128xi32>
    %5 = vector.broadcast %0 : vector<1x128xi32> to vector<8x128xi32>
    %6 = arith.cmpi eq, %4, %5 : vector<8x128xi32>
    %7 = arith.extui %6 : vector<8x128xi1> to vector<8x128xi32>
    %8 = arith.sitofp %7 : vector<8x128xi32> to vector<8x128xf32>
    %9 = vector.extract_strided_slice %2 {offsets = [0, 0], sizes = [8, 1], strides = [1, 1]} : vector<8x8xf32> to vector<8x1xf32>
    %10 = vector.broadcast %9 : vector<8x1xf32> to vector<8x128xf32>
    %11 = arith.mulf %8, %10 : vector<8x128xf32>
    %12 = vector.extract_strided_slice %1 {offsets = [0, 1], sizes = [8, 1], strides = [1, 1]} : vector<8x8xi32> to vector<8x1xi32>
    %13 = vector.broadcast %12 : vector<8x1xi32> to vector<8x128xi32>
    %14 = vector.broadcast %0 : vector<1x128xi32> to vector<8x128xi32>
    %15 = arith.cmpi eq, %13, %14 : vector<8x128xi32>
    %16 = arith.extui %15 : vector<8x128xi1> to vector<8x128xi32>
    %17 = arith.sitofp %16 : vector<8x128xi32> to vector<8x128xf32>
    %18 = vector.extract_strided_slice %2 {offsets = [0, 1], sizes = [8, 1], strides = [1, 1]} : vector<8x8xf32> to vector<8x1xf32>
    %19 = vector.broadcast %18 : vector<8x1xf32> to vector<8x128xf32>
    %20 = arith.mulf %17, %19 : vector<8x128xf32>
    %21 = arith.addf %11, %20 : vector<8x128xf32>
    %22 = vector.extract_strided_slice %1 {offsets = [0, 2], sizes = [8, 1], strides = [1, 1]} : vector<8x8xi32> to vector<8x1xi32>
    %23 = vector.broadcast %22 : vector<8x1xi32> to vector<8x128xi32>
    %24 = vector.broadcast %0 : vector<1x128xi32> to vector<8x128xi32>
    %25 = arith.cmpi eq, %23, %24 : vector<8x128xi32>
    %26 = arith.extui %25 : vector<8x128xi1> to vector<8x128xi32>
    %27 = arith.sitofp %26 : vector<8x128xi32> to vector<8x128xf32>
    %28 = vector.extract_strided_slice %2 {offsets = [0, 2], sizes = [8, 1], strides = [1, 1]} : vector<8x8xf32> to vector<8x1xf32>
    %29 = vector.broadcast %28 : vector<8x1xf32> to vector<8x128xf32>
    %30 = arith.mulf %27, %29 : vector<8x128xf32>
    %31 = arith.addf %21, %30 : vector<8x128xf32>
    %32 = vector.extract_strided_slice %1 {offsets = [0, 3], sizes = [8, 1], strides = [1, 1]} : vector<8x8xi32> to vector<8x1xi32>
    %33 = vector.broadcast %32 : vector<8x1xi32> to vector<8x128xi32>
    %34 = vector.broadcast %0 : vector<1x128xi32> to vector<8x128xi32>
    %35 = arith.cmpi eq, %33, %34 : vector<8x128xi32>
    %36 = arith.extui %35 : vector<8x128xi1> to vector<8x128xi32>
    %37 = arith.sitofp %36 : vector<8x128xi32> to vector<8x128xf32>
    %38 = vector.extract_strided_slice %2 {offsets = [0, 3], sizes = [8, 1], strides = [1, 1]} : vector<8x8xf32> to vector<8x1xf32>
    %39 = vector.broadcast %38 : vector<8x1xf32> to vector<8x128xf32>
    %40 = arith.mulf %37, %39 : vector<8x128xf32>
    %41 = arith.addf %31, %40 : vector<8x128xf32>
    %42 = vector.extract_strided_slice %1 {offsets = [0, 4], sizes = [8, 1], strides = [1, 1]} : vector<8x8xi32> to vector<8x1xi32>
    %43 = vector.broadcast %42 : vector<8x1xi32> to vector<8x128xi32>
    %44 = vector.broadcast %0 : vector<1x128xi32> to vector<8x128xi32>
    %45 = arith.cmpi eq, %43, %44 : vector<8x128xi32>
    %46 = arith.extui %45 : vector<8x128xi1> to vector<8x128xi32>
    %47 = arith.sitofp %46 : vector<8x128xi32> to vector<8x128xf32>
    %48 = vector.extract_strided_slice %2 {offsets = [0, 4], sizes = [8, 1], strides = [1, 1]} : vector<8x8xf32> to vector<8x1xf32>
    %49 = vector.broadcast %48 : vector<8x1xf32> to vector<8x128xf32>
    %50 = arith.mulf %47, %49 : vector<8x128xf32>
    %51 = arith.addf %41, %50 : vector<8x128xf32>
    %52 = vector.extract_strided_slice %1 {offsets = [0, 5], sizes = [8, 1], strides = [1, 1]} : vector<8x8xi32> to vector<8x1xi32>
    %53 = vector.broadcast %52 : vector<8x1xi32> to vector<8x128xi32>
    %54 = vector.broadcast %0 : vector<1x128xi32> to vector<8x128xi32>
    %55 = arith.cmpi eq, %53, %54 : vector<8x128xi32>
    %56 = arith.extui %55 : vector<8x128xi1> to vector<8x128xi32>
    %57 = arith.sitofp %56 : vector<8x128xi32> to vector<8x128xf32>
    %58 = vector.extract_strided_slice %2 {offsets = [0, 5], sizes = [8, 1], strides = [1, 1]} : vector<8x8xf32> to vector<8x1xf32>
    %59 = vector.broadcast %58 : vector<8x1xf32> to vector<8x128xf32>
    %60 = arith.mulf %57, %59 : vector<8x128xf32>
    %61 = arith.addf %51, %60 : vector<8x128xf32>
    %62 = vector.extract_strided_slice %1 {offsets = [0, 6], sizes = [8, 1], strides = [1, 1]} : vector<8x8xi32> to vector<8x1xi32>
    %63 = vector.broadcast %62 : vector<8x1xi32> to vector<8x128xi32>
    %64 = vector.broadcast %0 : vector<1x128xi32> to vector<8x128xi32>
    %65 = arith.cmpi eq, %63, %64 : vector<8x128xi32>
    %66 = arith.extui %65 : vector<8x128xi1> to vector<8x128xi32>
    %67 = arith.sitofp %66 : vector<8x128xi32> to vector<8x128xf32>
    %68 = vector.extract_strided_slice %2 {offsets = [0, 6], sizes = [8, 1], strides = [1, 1]} : vector<8x8xf32> to vector<8x1xf32>
    %69 = vector.broadcast %68 : vector<8x1xf32> to vector<8x128xf32>
    %70 = arith.mulf %67, %69 : vector<8x128xf32>
    %71 = arith.addf %61, %70 : vector<8x128xf32>
    %72 = vector.extract_strided_slice %1 {offsets = [0, 7], sizes = [8, 1], strides = [1, 1]} : vector<8x8xi32> to vector<8x1xi32>
    %73 = vector.broadcast %72 : vector<8x1xi32> to vector<8x128xi32>
    %74 = vector.broadcast %0 : vector<1x128xi32> to vector<8x128xi32>
    %75 = arith.cmpi eq, %73, %74 : vector<8x128xi32>
    %76 = arith.extui %75 : vector<8x128xi1> to vector<8x128xi32>
    %77 = arith.sitofp %76 : vector<8x128xi32> to vector<8x128xf32>
    %78 = vector.extract_strided_slice %2 {offsets = [0, 7], sizes = [8, 1], strides = [1, 1]} : vector<8x8xf32> to vector<8x1xf32>
    %79 = vector.broadcast %78 : vector<8x1xf32> to vector<8x128xf32>
    %80 = arith.mulf %77, %79 : vector<8x128xf32>
    %81 = arith.addf %71, %80 : vector<8x128xf32>
    %cst = arith.constant dense<0.000000e+00> : vector<8xf32>
    %82 = vector.multi_reduction <add>, %2, %cst [1] : vector<8x8xf32> to vector<8xf32>
    %83 = vector.shape_cast %82 : vector<8xf32> to vector<8x1xf32>
    %cst_3 = arith.constant 9.99999971E-10 : f32
    %84 = vector.broadcast %cst_3 : f32 to vector<8x1xf32>
    %85 = arith.maximumf %83, %84 : vector<8x1xf32>
    %cst_4 = arith.constant 1.000000e+00 : f32
    %86 = vector.broadcast %cst_4 : f32 to vector<8x1xf32>
    %87 = arith.divf %86, %85 : vector<8x1xf32>
    %88 = vector.broadcast %87 : vector<8x1xf32> to vector<8x128xf32>
    %89 = arith.mulf %81, %88 : vector<8x128xf32>
    %c0_5 = arith.constant 0 : index
    %c0_6 = arith.constant 0 : index
    %90 = vector.load %arg3[%c0_5, %c0_6] : memref<8x4xi32, #tpu.memory_space<vmem>>, vector<8x4xi32>
    %91 = vector.extract_strided_slice %90 {offsets = [0, 0], sizes = [8, 1], strides = [1, 1]} : vector<8x4xi32> to vector<8x1xi32>
    %92 = vector.broadcast %91 : vector<8x1xi32> to vector<8x128xi32>
    %93 = vector.broadcast %0 : vector<1x128xi32> to vector<8x128xi32>
    %94 = arith.cmpi eq, %92, %93 : vector<8x128xi32>
    %95 = arith.extui %94 : vector<8x128xi1> to vector<8x128xi32>
    %96 = arith.sitofp %95 : vector<8x128xi32> to vector<8x128xf32>
    %cst_7 = arith.constant 0.333333343 : f32
    %97 = vector.broadcast %cst_7 : f32 to vector<8x128xf32>
    %98 = arith.mulf %96, %97 : vector<8x128xf32>
    %99 = arith.addf %89, %98 : vector<8x128xf32>
    %100 = vector.extract_strided_slice %90 {offsets = [0, 1], sizes = [8, 1], strides = [1, 1]} : vector<8x4xi32> to vector<8x1xi32>
    %101 = vector.broadcast %100 : vector<8x1xi32> to vector<8x128xi32>
    %102 = vector.broadcast %0 : vector<1x128xi32> to vector<8x128xi32>
    %103 = arith.cmpi eq, %101, %102 : vector<8x128xi32>
    %104 = arith.extui %103 : vector<8x128xi1> to vector<8x128xi32>
    %105 = arith.sitofp %104 : vector<8x128xi32> to vector<8x128xf32>
    %cst_8 = arith.constant 0.333333343 : f32
    %106 = vector.broadcast %cst_8 : f32 to vector<8x128xf32>
    %107 = arith.mulf %105, %106 : vector<8x128xf32>
    %108 = arith.addf %99, %107 : vector<8x128xf32>
    %109 = vector.extract_strided_slice %90 {offsets = [0, 2], sizes = [8, 1], strides = [1, 1]} : vector<8x4xi32> to vector<8x1xi32>
    %110 = vector.broadcast %109 : vector<8x1xi32> to vector<8x128xi32>
    %111 = vector.broadcast %0 : vector<1x128xi32> to vector<8x128xi32>
    %112 = arith.cmpi eq, %110, %111 : vector<8x128xi32>
    %113 = arith.extui %112 : vector<8x128xi1> to vector<8x128xi32>
    %114 = arith.sitofp %113 : vector<8x128xi32> to vector<8x128xf32>
    %cst_9 = arith.constant 0.333333343 : f32
    %115 = vector.broadcast %cst_9 : f32 to vector<8x128xf32>
    %116 = arith.mulf %114, %115 : vector<8x128xf32>
    %117 = arith.addf %108, %116 : vector<8x128xf32>
    %118 = vector.extract_strided_slice %90 {offsets = [0, 3], sizes = [8, 1], strides = [1, 1]} : vector<8x4xi32> to vector<8x1xi32>
    %119 = vector.broadcast %118 : vector<8x1xi32> to vector<8x128xi32>
    %120 = vector.broadcast %0 : vector<1x128xi32> to vector<8x128xi32>
    %121 = arith.cmpi eq, %119, %120 : vector<8x128xi32>
    %122 = arith.extui %121 : vector<8x128xi1> to vector<8x128xi32>
    %123 = arith.sitofp %122 : vector<8x128xi32> to vector<8x128xf32>
    %cst_10 = arith.constant 1.000000e+00 : f32
    %124 = vector.broadcast %cst_10 : f32 to vector<8x128xf32>
    %125 = arith.mulf %123, %124 : vector<8x128xf32>
    %126 = arith.addf %117, %125 : vector<8x128xf32>
    %c0_11 = arith.constant 0 : index
    %c0_12 = arith.constant 0 : index
    %127 = vector.load %arg4[%c0_11, %c0_12] : memref<8x16xf32, #tpu.memory_space<vmem>>, vector<8x16xf32>
    %c0_13 = arith.constant 0 : index
    %c0_14 = arith.constant 0 : index
    %128 = vector.load %arg6[%c0_13, %c0_14] : memref<16x16xf32, #tpu.memory_space<vmem>>, vector<16x16xf32>
    %cst_15 = arith.constant dense<0.000000e+00> : vector<8x16xf32>
    %129 = tpu.matmul %127, %128, %cst_15 {dimension_numbers = #tpu.dot_dimension_numbers<[1], [0], [0], [1], [0, 0, 1, 1], [], []>} : vector<8x16xf32>, vector<16x16xf32>, vector<8x16xf32> -> vector<8x16xf32>
    %c0_16 = arith.constant 0 : index
    %c0_17 = arith.constant 0 : index
    %130 = vector.load %arg7[%c0_16, %c0_17] : memref<1x16xf32, #tpu.memory_space<vmem>>, vector<1x16xf32>
    %131 = vector.broadcast %130 : vector<1x16xf32> to vector<8x16xf32>
    %132 = arith.addf %129, %131 : vector<8x16xf32>
    %133 = arith.mulf %132, %132 : vector<8x16xf32>
    %134 = arith.mulf %132, %133 : vector<8x16xf32>
    %cst_18 = arith.constant 4.471500e-02 : f32
    %135 = vector.broadcast %cst_18 : f32 to vector<8x16xf32>
    %136 = arith.mulf %135, %134 : vector<8x16xf32>
    %137 = arith.addf %132, %136 : vector<8x16xf32>
    %cst_19 = arith.constant 0.797884583 : f32
    %138 = vector.broadcast %cst_19 : f32 to vector<8x16xf32>
    %139 = arith.mulf %138, %137 : vector<8x16xf32>
    %140 = math.tanh %139 : vector<8x16xf32>
    %cst_20 = arith.constant 1.000000e+00 : f32
    %141 = vector.broadcast %cst_20 : f32 to vector<8x16xf32>
    %142 = arith.addf %141, %140 : vector<8x16xf32>
    %cst_21 = arith.constant 5.000000e-01 : f32
    %143 = vector.broadcast %cst_21 : f32 to vector<8x16xf32>
    %144 = arith.mulf %143, %142 : vector<8x16xf32>
    %145 = arith.mulf %132, %144 : vector<8x16xf32>
    %c0_22 = arith.constant 0 : index
    %c0_23 = arith.constant 0 : index
    %146 = vector.load %arg5[%c0_22, %c0_23] : memref<128x64xf32, #tpu.memory_space<vmem>>, vector<128x64xf32>
    %cst_24 = arith.constant dense<0.000000e+00> : vector<8x64xf32>
    %147 = tpu.matmul %126, %146, %cst_24 {dimension_numbers = #tpu.dot_dimension_numbers<[1], [0], [0], [1], [0, 0, 1, 1], [], []>} : vector<8x128xf32>, vector<128x64xf32>, vector<8x64xf32> -> vector<8x64xf32>
    %c0_25 = arith.constant 0 : index
    %c0_26 = arith.constant 0 : index
    %148 = vector.load %arg9[%c0_25, %c0_26] : memref<1x64xf32, #tpu.memory_space<vmem>>, vector<1x64xf32>
    %149 = vector.broadcast %148 : vector<1x64xf32> to vector<8x64xf32>
    %150 = arith.addf %147, %149 : vector<8x64xf32>
    %c0_27 = arith.constant 0 : index
    %c0_28 = arith.constant 0 : index
    %151 = vector.load %arg8[%c0_27, %c0_28] : memref<16x64xf32, #tpu.memory_space<vmem>>, vector<16x64xf32>
    %cst_29 = arith.constant dense<0.000000e+00> : vector<8x64xf32>
    %152 = tpu.matmul %145, %151, %cst_29 {dimension_numbers = #tpu.dot_dimension_numbers<[1], [0], [0], [1], [0, 0, 1, 1], [], []>} : vector<8x16xf32>, vector<16x64xf32>, vector<8x64xf32> -> vector<8x64xf32>
    %153 = arith.addf %150, %152 : vector<8x64xf32>
    %154 = arith.mulf %153, %153 : vector<8x64xf32>
    %155 = arith.mulf %153, %154 : vector<8x64xf32>
    %cst_30 = arith.constant 4.471500e-02 : f32
    %156 = vector.broadcast %cst_30 : f32 to vector<8x64xf32>
    %157 = arith.mulf %156, %155 : vector<8x64xf32>
    %158 = arith.addf %153, %157 : vector<8x64xf32>
    %cst_31 = arith.constant 0.797884583 : f32
    %159 = vector.broadcast %cst_31 : f32 to vector<8x64xf32>
    %160 = arith.mulf %159, %158 : vector<8x64xf32>
    %161 = math.tanh %160 : vector<8x64xf32>
    %cst_32 = arith.constant 1.000000e+00 : f32
    %162 = vector.broadcast %cst_32 : f32 to vector<8x64xf32>
    %163 = arith.addf %162, %161 : vector<8x64xf32>
    %cst_33 = arith.constant 5.000000e-01 : f32
    %164 = vector.broadcast %cst_33 : f32 to vector<8x64xf32>
    %165 = arith.mulf %164, %163 : vector<8x64xf32>
    %166 = arith.mulf %153, %165 : vector<8x64xf32>
    %c0_34 = arith.constant 0 : index
    %c0_35 = arith.constant 0 : index
    %167 = vector.load %arg10[%c0_34, %c0_35] : memref<64x64xf32, #tpu.memory_space<vmem>>, vector<64x64xf32>
    %cst_36 = arith.constant dense<0.000000e+00> : vector<8x64xf32>
    %168 = tpu.matmul %166, %167, %cst_36 {dimension_numbers = #tpu.dot_dimension_numbers<[1], [0], [0], [1], [0, 0, 1, 1], [], []>} : vector<8x64xf32>, vector<64x64xf32>, vector<8x64xf32> -> vector<8x64xf32>
    %c0_37 = arith.constant 0 : index
    %c0_38 = arith.constant 0 : index
    %169 = vector.load %arg11[%c0_37, %c0_38] : memref<1x64xf32, #tpu.memory_space<vmem>>, vector<1x64xf32>
    %170 = vector.broadcast %169 : vector<1x64xf32> to vector<8x64xf32>
    %171 = arith.addf %168, %170 : vector<8x64xf32>
    %172 = arith.mulf %171, %171 : vector<8x64xf32>
    %173 = arith.mulf %171, %172 : vector<8x64xf32>
    %cst_39 = arith.constant 4.471500e-02 : f32
    %174 = vector.broadcast %cst_39 : f32 to vector<8x64xf32>
    %175 = arith.mulf %174, %173 : vector<8x64xf32>
    %176 = arith.addf %171, %175 : vector<8x64xf32>
    %cst_40 = arith.constant 0.797884583 : f32
    %177 = vector.broadcast %cst_40 : f32 to vector<8x64xf32>
    %178 = arith.mulf %177, %176 : vector<8x64xf32>
    %179 = math.tanh %178 : vector<8x64xf32>
    %cst_41 = arith.constant 1.000000e+00 : f32
    %180 = vector.broadcast %cst_41 : f32 to vector<8x64xf32>
    %181 = arith.addf %180, %179 : vector<8x64xf32>
    %cst_42 = arith.constant 5.000000e-01 : f32
    %182 = vector.broadcast %cst_42 : f32 to vector<8x64xf32>
    %183 = arith.mulf %182, %181 : vector<8x64xf32>
    %184 = arith.mulf %171, %183 : vector<8x64xf32>
    %c0_43 = arith.constant 0 : index
    %c0_44 = arith.constant 0 : index
    %185 = vector.load %arg12[%c0_43, %c0_44] : memref<64x32xf32, #tpu.memory_space<vmem>>, vector<64x32xf32>
    %cst_45 = arith.constant dense<0.000000e+00> : vector<8x32xf32>
    %186 = tpu.matmul %184, %185, %cst_45 {dimension_numbers = #tpu.dot_dimension_numbers<[1], [0], [0], [1], [0, 0, 1, 1], [], []>} : vector<8x64xf32>, vector<64x32xf32>, vector<8x32xf32> -> vector<8x32xf32>
    %c0_46 = arith.constant 0 : index
    %c0_47 = arith.constant 0 : index
    %187 = vector.load %arg13[%c0_46, %c0_47] : memref<1x32xf32, #tpu.memory_space<vmem>>, vector<1x32xf32>
    %188 = vector.broadcast %187 : vector<1x32xf32> to vector<8x32xf32>
    %189 = arith.addf %186, %188 : vector<8x32xf32>
    %c0_48 = arith.constant 0 : index
    %c0_49 = arith.constant 0 : index
    %190 = vector.load %arg14[%c0_48, %c0_49] : memref<1x32xf32, #tpu.memory_space<vmem>>, vector<1x32xf32>
    %c0_50 = arith.constant 0 : index
    %c0_51 = arith.constant 0 : index
    %191 = vector.load %arg15[%c0_50, %c0_51] : memref<1x32xf32, #tpu.memory_space<vmem>>, vector<1x32xf32>
    %cst_52 = arith.constant dense<0.000000e+00> : vector<8xf32>
    %192 = vector.multi_reduction <add>, %189, %cst_52 [1] : vector<8x32xf32> to vector<8xf32>
    %193 = vector.shape_cast %192 : vector<8xf32> to vector<8x1xf32>
    %cst_53 = arith.constant 3.200000e+01 : f32
    %194 = vector.broadcast %cst_53 : f32 to vector<8x1xf32>
    %195 = arith.divf %193, %194 : vector<8x1xf32>
    %196 = vector.broadcast %195 : vector<8x1xf32> to vector<8x32xf32>
    %197 = arith.subf %189, %196 : vector<8x32xf32>
    %198 = arith.mulf %197, %197 : vector<8x32xf32>
    %cst_54 = arith.constant dense<0.000000e+00> : vector<8xf32>
    %199 = vector.multi_reduction <add>, %198, %cst_54 [1] : vector<8x32xf32> to vector<8xf32>
    %200 = vector.shape_cast %199 : vector<8xf32> to vector<8x1xf32>
    %cst_55 = arith.constant 3.200000e+01 : f32
    %201 = vector.broadcast %cst_55 : f32 to vector<8x1xf32>
    %202 = arith.divf %200, %201 : vector<8x1xf32>
    %203 = vector.broadcast %195 : vector<8x1xf32> to vector<8x32xf32>
    %204 = arith.subf %189, %203 : vector<8x32xf32>
    %cst_56 = arith.constant 9.99999974E-6 : f32
    %205 = vector.broadcast %cst_56 : f32 to vector<8x1xf32>
    %206 = arith.addf %202, %205 : vector<8x1xf32>
    %207 = math.rsqrt %206 : vector<8x1xf32>
    %208 = vector.broadcast %207 : vector<8x1xf32> to vector<8x32xf32>
    %209 = arith.mulf %204, %208 : vector<8x32xf32>
    %210 = vector.broadcast %190 : vector<1x32xf32> to vector<8x32xf32>
    %211 = arith.mulf %209, %210 : vector<8x32xf32>
    %212 = vector.broadcast %191 : vector<1x32xf32> to vector<8x32xf32>
    %213 = arith.addf %211, %212 : vector<8x32xf32>
    %c0_57 = arith.constant 0 : index
    %c0_58 = arith.constant 0 : index
    %214 = vector.load %arg16[%c0_57, %c0_58] : memref<32x64xf32, #tpu.memory_space<vmem>>, vector<32x64xf32>
    %cst_59 = arith.constant dense<0.000000e+00> : vector<8x64xf32>
    %215 = tpu.matmul %213, %214, %cst_59 {dimension_numbers = #tpu.dot_dimension_numbers<[1], [0], [0], [1], [0, 0, 1, 1], [], []>} : vector<8x32xf32>, vector<32x64xf32>, vector<8x64xf32> -> vector<8x64xf32>
    %c0_60 = arith.constant 0 : index
    %c0_61 = arith.constant 0 : index
    %216 = vector.load %arg17[%c0_60, %c0_61] : memref<1x64xf32, #tpu.memory_space<vmem>>, vector<1x64xf32>
    %217 = vector.broadcast %216 : vector<1x64xf32> to vector<8x64xf32>
    %218 = arith.addf %215, %217 : vector<8x64xf32>
    %219 = arith.mulf %218, %218 : vector<8x64xf32>
    %220 = arith.mulf %218, %219 : vector<8x64xf32>
    %cst_62 = arith.constant 4.471500e-02 : f32
    %221 = vector.broadcast %cst_62 : f32 to vector<8x64xf32>
    %222 = arith.mulf %221, %220 : vector<8x64xf32>
    %223 = arith.addf %218, %222 : vector<8x64xf32>
    %cst_63 = arith.constant 0.797884583 : f32
    %224 = vector.broadcast %cst_63 : f32 to vector<8x64xf32>
    %225 = arith.mulf %224, %223 : vector<8x64xf32>
    %226 = math.tanh %225 : vector<8x64xf32>
    %cst_64 = arith.constant 1.000000e+00 : f32
    %227 = vector.broadcast %cst_64 : f32 to vector<8x64xf32>
    %228 = arith.addf %227, %226 : vector<8x64xf32>
    %cst_65 = arith.constant 5.000000e-01 : f32
    %229 = vector.broadcast %cst_65 : f32 to vector<8x64xf32>
    %230 = arith.mulf %229, %228 : vector<8x64xf32>
    %231 = arith.mulf %218, %230 : vector<8x64xf32>
    %c0_66 = arith.constant 0 : index
    %c0_67 = arith.constant 0 : index
    %232 = vector.load %arg18[%c0_66, %c0_67] : memref<64x16xf32, #tpu.memory_space<vmem>>, vector<64x16xf32>
    %cst_68 = arith.constant dense<0.000000e+00> : vector<8x16xf32>
    %233 = tpu.matmul %231, %232, %cst_68 {dimension_numbers = #tpu.dot_dimension_numbers<[1], [0], [0], [1], [0, 0, 1, 1], [], []>} : vector<8x64xf32>, vector<64x16xf32>, vector<8x16xf32> -> vector<8x16xf32>
    %c0_69 = arith.constant 0 : index
    %c0_70 = arith.constant 0 : index
    %234 = vector.load %arg19[%c0_69, %c0_70] : memref<1x16xf32, #tpu.memory_space<vmem>>, vector<1x16xf32>
    %235 = vector.broadcast %234 : vector<1x16xf32> to vector<8x16xf32>
    %236 = arith.addf %233, %235 : vector<8x16xf32>
    %c0_71 = arith.constant 0 : index
    %c0_72 = arith.constant 0 : index
    %237 = vector.load %arg20[%c0_71, %c0_72] : memref<1x16xf32, #tpu.memory_space<vmem>>, vector<1x16xf32>
    %c0_73 = arith.constant 0 : index
    %c0_74 = arith.constant 0 : index
    %238 = vector.load %arg21[%c0_73, %c0_74] : memref<1x16xf32, #tpu.memory_space<vmem>>, vector<1x16xf32>
    %cst_75 = arith.constant dense<0.000000e+00> : vector<8xf32>
    %239 = vector.multi_reduction <add>, %236, %cst_75 [1] : vector<8x16xf32> to vector<8xf32>
    %240 = vector.shape_cast %239 : vector<8xf32> to vector<8x1xf32>
    %cst_76 = arith.constant 1.600000e+01 : f32
    %241 = vector.broadcast %cst_76 : f32 to vector<8x1xf32>
    %242 = arith.divf %240, %241 : vector<8x1xf32>
    %243 = vector.broadcast %242 : vector<8x1xf32> to vector<8x16xf32>
    %244 = arith.subf %236, %243 : vector<8x16xf32>
    %245 = arith.mulf %244, %244 : vector<8x16xf32>
    %cst_77 = arith.constant dense<0.000000e+00> : vector<8xf32>
    %246 = vector.multi_reduction <add>, %245, %cst_77 [1] : vector<8x16xf32> to vector<8xf32>
    %247 = vector.shape_cast %246 : vector<8xf32> to vector<8x1xf32>
    %cst_78 = arith.constant 1.600000e+01 : f32
    %248 = vector.broadcast %cst_78 : f32 to vector<8x1xf32>
    %249 = arith.divf %247, %248 : vector<8x1xf32>
    %250 = vector.broadcast %242 : vector<8x1xf32> to vector<8x16xf32>
    %251 = arith.subf %236, %250 : vector<8x16xf32>
    %cst_79 = arith.constant 9.99999974E-6 : f32
    %252 = vector.broadcast %cst_79 : f32 to vector<8x1xf32>
    %253 = arith.addf %249, %252 : vector<8x1xf32>
    %254 = math.rsqrt %253 : vector<8x1xf32>
    %255 = vector.broadcast %254 : vector<8x1xf32> to vector<8x16xf32>
    %256 = arith.mulf %251, %255 : vector<8x16xf32>
    %257 = vector.broadcast %237 : vector<1x16xf32> to vector<8x16xf32>
    %258 = arith.mulf %256, %257 : vector<8x16xf32>
    %259 = vector.broadcast %238 : vector<1x16xf32> to vector<8x16xf32>
    %260 = arith.addf %258, %259 : vector<8x16xf32>
    %cst_80 = arith.constant 0.000000e+00 : f32
    %261 = vector.broadcast %cst_80 : f32 to vector<8x80xf32>
    %262 = tpu.concatenate %213, %260, %261 in 1 : vector<8x32xf32>, vector<8x16xf32>, vector<8x80xf32> -> vector<8x128xf32>
    %c0_81 = arith.constant 0 : index
    %c0_82 = arith.constant 0 : index
    %263 = vector.load %arg22[%c0_81, %c0_82] : memref<8x128xf32, #tpu.memory_space<vmem>>, vector<8x128xf32>
    tpu.vector_store %arg22[%c0_81, %c0_82], %262 {strides = array<i32>} : memref<8x128xf32, #tpu.memory_space<vmem>>, vector<8x128xf32>,
    return
  }
  func.func @transform_0(%arg0: i32) -> (i32, i32) {
    %c0_i32 = arith.constant 0 : i32
    %c0_i32_0 = arith.constant 0 : i32
    return %arg0, %c0_i32 : i32, i32
  }
  func.func @transform_1(%arg0: i32) -> (i32, i32) {
    %c0_i32 = arith.constant 0 : i32
    %c0_i32_0 = arith.constant 0 : i32
    return %arg0, %c0_i32 : i32, i32
  }
  func.func @transform_2(%arg0: i32) -> (i32, i32) {
    %c0_i32 = arith.constant 0 : i32
    %c0_i32_0 = arith.constant 0 : i32
    return %arg0, %c0_i32 : i32, i32
  }
  func.func @transform_3(%arg0: i32) -> (i32, i32) {
    %c0_i32 = arith.constant 0 : i32
    %c0_i32_0 = arith.constant 0 : i32
    return %arg0, %c0_i32 : i32, i32
  }
  func.func @transform_4(%arg0: i32) -> (i32, i32) {
    %c0_i32 = arith.constant 0 : i32
    %c0_i32_0 = arith.constant 0 : i32
    %c0_i32_1 = arith.constant 0 : i32
    return %c0_i32, %c0_i32_0 : i32, i32
  }
  func.func @transform_5(%arg0: i32) -> (i32, i32) {
    %c0_i32 = arith.constant 0 : i32
    %c0_i32_0 = arith.constant 0 : i32
    %c0_i32_1 = arith.constant 0 : i32
    return %c0_i32, %c0_i32_0 : i32, i32
  }
  func.func @transform_6(%arg0: i32) -> (i32, i32) {
    %c0_i32 = arith.constant 0 : i32
    %c0_i32_0 = arith.constant 0 : i32
    %c0_i32_1 = arith.constant 0 : i32
    return %c0_i32, %c0_i32_0 : i32, i32
  }
  func.func @transform_7(%arg0: i32) -> (i32, i32) {
    %c0_i32 = arith.constant 0 : i32
    %c0_i32_0 = arith.constant 0 : i32
    %c0_i32_1 = arith.constant 0 : i32
    return %c0_i32, %c0_i32_0 : i32, i32
  }
  func.func @transform_8(%arg0: i32) -> (i32, i32) {
    %c0_i32 = arith.constant 0 : i32
    %c0_i32_0 = arith.constant 0 : i32
    %c0_i32_1 = arith.constant 0 : i32
    return %c0_i32, %c0_i32_0 : i32, i32
  }
  func.func @transform_9(%arg0: i32) -> (i32, i32) {
    %c0_i32 = arith.constant 0 : i32
    %c0_i32_0 = arith.constant 0 : i32
    %c0_i32_1 = arith.constant 0 : i32
    return %c0_i32, %c0_i32_0 : i32, i32
  }
  func.func @transform_10(%arg0: i32) -> (i32, i32) {
    %c0_i32 = arith.constant 0 : i32
    %c0_i32_0 = arith.constant 0 : i32
    %c0_i32_1 = arith.constant 0 : i32
    return %c0_i32, %c0_i32_0 : i32, i32
  }
  func.func @transform_11(%arg0: i32) -> (i32, i32) {
    %c0_i32 = arith.constant 0 : i32
    %c0_i32_0 = arith.constant 0 : i32
    %c0_i32_1 = arith.constant 0 : i32
    return %c0_i32, %c0_i32_0 : i32, i32
  }
  func.func @transform_12(%arg0: i32) -> (i32, i32) {
    %c0_i32 = arith.constant 0 : i32
    %c0_i32_0 = arith.constant 0 : i32
    %c0_i32_1 = arith.constant 0 : i32
    return %c0_i32, %c0_i32_0 : i32, i32
  }
  func.func @transform_13(%arg0: i32) -> (i32, i32) {
    %c0_i32 = arith.constant 0 : i32
    %c0_i32_0 = arith.constant 0 : i32
    %c0_i32_1 = arith.constant 0 : i32
    return %c0_i32, %c0_i32_0 : i32, i32
  }
  func.func @transform_14(%arg0: i32) -> (i32, i32) {
    %c0_i32 = arith.constant 0 : i32
    %c0_i32_0 = arith.constant 0 : i32
    %c0_i32_1 = arith.constant 0 : i32
    return %c0_i32, %c0_i32_0 : i32, i32
  }
  func.func @transform_15(%arg0: i32) -> (i32, i32) {
    %c0_i32 = arith.constant 0 : i32
    %c0_i32_0 = arith.constant 0 : i32
    %c0_i32_1 = arith.constant 0 : i32
    return %c0_i32, %c0_i32_0 : i32, i32
  }
  func.func @transform_16(%arg0: i32) -> (i32, i32) {
    %c0_i32 = arith.constant 0 : i32
    %c0_i32_0 = arith.constant 0 : i32
    %c0_i32_1 = arith.constant 0 : i32
    return %c0_i32, %c0_i32_0 : i32, i32
  }
  func.func @transform_17(%arg0: i32) -> (i32, i32) {
    %c0_i32 = arith.constant 0 : i32
    %c0_i32_0 = arith.constant 0 : i32
    %c0_i32_1 = arith.constant 0 : i32
    return %c0_i32, %c0_i32_0 : i32, i32
  }
  func.func @transform_18(%arg0: i32) -> (i32, i32) {
    %c0_i32 = arith.constant 0 : i32
    %c0_i32_0 = arith.constant 0 : i32
    %c0_i32_1 = arith.constant 0 : i32
    return %c0_i32, %c0_i32_0 : i32, i32
  }
  func.func @transform_19(%arg0: i32) -> (i32, i32) {
    %c0_i32 = arith.constant 0 : i32
    %c0_i32_0 = arith.constant 0 : i32
    %c0_i32_1 = arith.constant 0 : i32
    return %c0_i32, %c0_i32_0 : i32, i32
  }
  func.func @transform_20(%arg0: i32) -> (i32, i32) {
    %c0_i32 = arith.constant 0 : i32
    %c0_i32_0 = arith.constant 0 : i32
    %c0_i32_1 = arith.constant 0 : i32
    return %c0_i32, %c0_i32_0 : i32, i32
  }
  func.func @transform_21(%arg0: i32) -> (i32, i32) {
    %c0_i32 = arith.constant 0 : i32
    %c0_i32_0 = arith.constant 0 : i32
    return %arg0, %c0_i32 : i32, i32
  }
}

</mosaic_0001>

<llo_original>
// kernel: tv_encoder_apply.1
$region0: #{tv_encoder_apply.1}
  #allocation0 [shape = 'u32[]', space=smem, size = 0x4, offset = 0x4, fixed_abs, tag = 'smem constant byte address 0x4 - core index']
  #allocation1 [shape = 'u32[144,128]{1,0:T(1,128)}', space=vmem, size = 0x12000, scoped, tag = 'internal scratch']
  %s0 = inlined_call_operand.vmem [shape: s32[16,8], index: 0, kind: input, shape index: {}]
  %s1 = inlined_call_operand.vmem [shape: f32[16,8], index: 1, kind: input, shape index: {}]
  %s2 = inlined_call_operand.vmem [shape: s32[16,4], index: 2, kind: input, shape index: {}]
  %s3 = inlined_call_operand.vmem [shape: f32[16,16], index: 3, kind: input, shape index: {}]
  %s4 = inlined_call_operand.vmem [shape: f32[128,64], index: 4, kind: input, shape index: {}]
  %s5 = inlined_call_operand.vmem [shape: f32[16,16], index: 5, kind: input, shape index: {}]
  %s6 = inlined_call_operand.vmem [shape: f32[1,16], index: 6, kind: input, shape index: {}]
  %s7 = inlined_call_operand.vmem [shape: f32[16,64], index: 7, kind: input, shape index: {}]
  %s8 = inlined_call_operand.vmem [shape: f32[1,64], index: 8, kind: input, shape index: {}]
  %s9 = inlined_call_operand.vmem [shape: f32[64,64], index: 9, kind: input, shape index: {}]
  %s10 = inlined_call_operand.vmem [shape: f32[1,64], index: 10, kind: input, shape index: {}]
  %s11 = inlined_call_operand.vmem [shape: f32[64,32], index: 11, kind: input, shape index: {}]
  %s12 = inlined_call_operand.vmem [shape: f32[1,32], index: 12, kind: input, shape index: {}]
  %s13 = inlined_call_operand.vmem [shape: f32[1,32], index: 13, kind: input, shape index: {}]
  %s14 = inlined_call_operand.vmem [shape: f32[1,32], index: 14, kind: input, shape index: {}]
  %s15 = inlined_call_operand.vmem [shape: f32[32,64], index: 15, kind: input, shape index: {}]
  %s16 = inlined_call_operand.vmem [shape: f32[1,64], index: 16, kind: input, shape index: {}]
  %s17 = inlined_call_operand.vmem [shape: f32[64,16], index: 17, kind: input, shape index: {}]
  %s18 = inlined_call_operand.vmem [shape: f32[1,16], index: 18, kind: input, shape index: {}]
  %s19 = inlined_call_operand.vmem [shape: f32[1,16], index: 19, kind: input, shape index: {}]
  %s20 = inlined_call_operand.vmem [shape: f32[1,16], index: 20, kind: input, shape index: {}]
  %s21 = inlined_call_operand.vmem [shape: f32[16,128], index: 21, kind: output, shape index: {}]
  %s22 = sld [smem:[#allocation0]]
  $region117: #{tv_encoder_apply.1} parent=0
    _
  %s24 = ssub.s32 1, %s22
  %s25 = scalar_select 0, %s24, %s22
  loop: start=0, step=1, limit=4
  $region2: #{tv_encoder_apply.1} parent=0 // loop_pre_header
    _
  $region3: #{tv_encoder_apply.1} parent=0 // loop_header
    %s27 = sphi 0, %s31
    %p28 = scmp.ge.s32.totalorder %s27, 4
    %s37 = sphi 0, %s39
    %s40 = sphi 0, %s37
    %s41 = sphi 0, %s40
    %s57 = sphi 0, %s41
    %s63 = sphi 0, %s65
    %s66 = sphi 0, %s63
    %s67 = sphi 0, %s66
    %s83 = sphi 0, %s67
    %s89 = sphi 0, %s91
    %s92 = sphi 0, %s89
    %s93 = sphi 0, %s92
    %s109 = sphi 0, %s93
    %s115 = sphi 0, %s117
    %s118 = sphi 0, %s115
    %s119 = sphi 0, %s118
    %s135 = sphi 0, %s119
    %s139 = sphi 0, %s139
    %s141 = sphi 0, %s139
    %s142 = sphi 0, %s141
    %s156 = sphi 0, %s142
    %s160 = sphi 0, %s160
    %s162 = sphi 0, %s160
    %s163 = sphi 0, %s162
    %s177 = sphi 0, %s163
    %s181 = sphi 0, %s181
    %s183 = sphi 0, %s181
    %s184 = sphi 0, %s183
    %s198 = sphi 0, %s184
    %s202 = sphi 0, %s202
    %s204 = sphi 0, %s202
    %s205 = sphi 0, %s204
    %s219 = sphi 0, %s205
    %s223 = sphi 0, %s223
    %s225 = sphi 0, %s223
    %s226 = sphi 0, %s225
    %s240 = sphi 0, %s226
    %s244 = sphi 0, %s244
    %s246 = sphi 0, %s244
    %s247 = sphi 0, %s246
    %s261 = sphi 0, %s247
    %s265 = sphi 0, %s265
    %s267 = sphi 0, %s265
    %s268 = sphi 0, %s267
    %s282 = sphi 0, %s268
    %s286 = sphi 0, %s286
    %s288 = sphi 0, %s286
    %s289 = sphi 0, %s288
    %s303 = sphi 0, %s289
    %s307 = sphi 0, %s307
    %s309 = sphi 0, %s307
    %s310 = sphi 0, %s309
    %s324 = sphi 0, %s310
    %s328 = sphi 0, %s328
    %s330 = sphi 0, %s328
    %s331 = sphi 0, %s330
    %s345 = sphi 0, %s331
    %s349 = sphi 0, %s349
    %s351 = sphi 0, %s349
    %s352 = sphi 0, %s351
    %s366 = sphi 0, %s352
    %s370 = sphi 0, %s370
    %s372 = sphi 0, %s370
    %s373 = sphi 0, %s372
    %s387 = sphi 0, %s373
    %s391 = sphi 0, %s391
    %s393 = sphi 0, %s391
    %s394 = sphi 0, %s393
    %s408 = sphi 0, %s394
    %s412 = sphi 0, %s412
    %s414 = sphi 0, %s412
    %s415 = sphi 0, %s414
    %s429 = sphi 0, %s415
    %s433 = sphi 0, %s433
    %s435 = sphi 0, %s433
    %s436 = sphi 0, %s435
    %s450 = sphi 0, %s436
    %s454 = sphi 0, %s454
    %s456 = sphi 0, %s454
    %s457 = sphi 0, %s456
    %s471 = sphi 0, %s457
    %s475 = sphi 0, %s475
    %s477 = sphi 0, %s475
    %s478 = sphi 0, %s477
    %s492 = sphi 0, %s478
    %s498 = sphi 0, %s500
    %s501 = sphi 0, %s498
    %s502 = sphi 0, %s501
    %s518 = sphi 0, %s502
  $region4: #{tv_encoder_apply.1} parent=0 // loop_header_branch
    %30 = sbr.rel (%p28) target = $region8
  $region5: #{tv_encoder_apply.1} parent=0 // loop_body
    %s32 = ssub.s32 %s27, 1
    %s33 = ssub.s32 %s27, 2
    %s34 = sadd.s32 %s27, 1
    %s35 = ssub.s32 %s27, %s34
    %p36 = scmp.eq.s32.totalorder %s35, 0
    %s38 = sadd.s32 %s37, 1
    %s39 = scalar_select %p36, %s37, %s38
    %p42 = pneg %p36
    %p43 = scmp.eq.s32.totalorder %s27, 1
    %p44 = por %p42, %p43
    %p45 = scmp.ne.s32.totalorder %s37, %s40
    %p46 = scmp.eq.s32.totalorder %s27, 0
    %p47 = por %p45, %p46
    %p48 = scmp.ne.s32.totalorder %s37, %s40
    %p49 = scmp.eq.s32.totalorder %s32, 1
    %p50 = por %p48, %p49
    %p51 = scmp.ne.s32.totalorder %s40, %s41
    %p52 = scmp.eq.s32.totalorder %s32, 0
    %p53 = por %p51, %p52
    %p54 = scmp.ne.s32.totalorder %s40, %s41
    %p55 = scmp.eq.s32.totalorder %s33, 1
    %p56 = por %p54, %p55
    %p58 = scmp.ne.s32.totalorder %s41, %s57
    %p59 = scmp.eq.s32.totalorder %s33, 0
    %p60 = por %p58, %p59
    %s61 = ssub.s32 %s27, %s34
    %p62 = scmp.eq.s32.totalorder %s61, 0
    %s64 = sadd.s32 %s63, 1
    %s65 = scalar_select %p62, %s63, %s64
    %p68 = pneg %p62
    %p69 = scmp.eq.s32.totalorder %s27, 1
    %p70 = por %p68, %p69
    %p71 = scmp.ne.s32.totalorder %s63, %s66
    %p72 = scmp.eq.s32.totalorder %s27, 0
    %p73 = por %p71, %p72
    %p74 = scmp.ne.s32.totalorder %s63, %s66
    %p75 = scmp.eq.s32.totalorder %s32, 1
    %p76 = por %p74, %p75
    %p77 = scmp.ne.s32.totalorder %s66, %s67
    %p78 = scmp.eq.s32.totalorder %s32, 0
    %p79 = por %p77, %p78
    %p80 = scmp.ne.s32.totalorder %s66, %s67
    %p81 = scmp.eq.s32.totalorder %s33, 1
    %p82 = por %p80, %p81
    %p84 = scmp.ne.s32.totalorder %s67, %s83
    %p85 = scmp.eq.s32.totalorder %s33, 0
    %p86 = por %p84, %p85
    %s87 = ssub.s32 %s27, %s34
    %p88 = scmp.eq.s32.totalorder %s87, 0
    %s90 = sadd.s32 %s89, 1
    %s91 = scalar_select %p88, %s89, %s90
    %p94 = pneg %p88
    %p95 = scmp.eq.s32.totalorder %s27, 1
    %p96 = por %p94, %p95
    %p97 = scmp.ne.s32.totalorder %s89, %s92
    %p98 = scmp.eq.s32.totalorder %s27, 0
    %p99 = por %p97, %p98
    %p100 = scmp.ne.s32.totalorder %s89, %s92
    %p101 = scmp.eq.s32.totalorder %s32, 1
    %p102 = por %p100, %p101
    %p103 = scmp.ne.s32.totalorder %s92, %s93
    %p104 = scmp.eq.s32.totalorder %s32, 0
    %p105 = por %p103, %p104
    %p106 = scmp.ne.s32.totalorder %s92, %s93
    %p107 = scmp.eq.s32.totalorder %s33, 1
    %p108 = por %p106, %p107
    %p110 = scmp.ne.s32.totalorder %s93, %s109
    %p111 = scmp.eq.s32.totalorder %s33, 0
    %p112 = por %p110, %p111
    %s113 = ssub.s32 %s27, %s34
    %p114 = scmp.eq.s32.totalorder %s113, 0
    %s116 = sadd.s32 %s115, 1
    %s117 = scalar_select %p114, %s115, %s116
    %p120 = pneg %p114
    %p121 = scmp.eq.s32.totalorder %s27, 1
    %p122 = por %p120, %p121
    %p123 = scmp.ne.s32.totalorder %s115, %s118
    %p124 = scmp.eq.s32.totalorder %s27, 0
    %p125 = por %p123, %p124
    %p126 = scmp.ne.s32.totalorder %s115, %s118
    %p127 = scmp.eq.s32.totalorder %s32, 1
    %p128 = por %p126, %p127
    %p129 = scmp.ne.s32.totalorder %s118, %s119
    %p130 = scmp.eq.s32.totalorder %s32, 0
    %p131 = por %p129, %p130
    %p132 = scmp.ne.s32.totalorder %s118, %s119
    %p133 = scmp.eq.s32.totalorder %s33, 1
    %p134 = por %p132, %p133
    %p136 = scmp.ne.s32.totalorder %s119, %s135
    %p137 = scmp.eq.s32.totalorder %s33, 0
    %p138 = por %p136, %p137
    %s140 = sadd.s32 %s139, 1
    %p143 = scmp.eq.s32.totalorder %s27, 1
    %p144 = scmp.ne.s32.totalorder %s139, %s141
    %p145 = scmp.eq.s32.totalorder %s27, 0
    %p146 = por %p144, %p145
    %p147 = scmp.ne.s32.totalorder %s139, %s141
    %p148 = scmp.eq.s32.totalorder %s32, 1
    %p149 = por %p147, %p148
    %p150 = scmp.ne.s32.totalorder %s141, %s142
    %p151 = scmp.eq.s32.totalorder %s32, 0
    %p152 = por %p150, %p151
    %p153 = scmp.ne.s32.totalorder %s141, %s142
    %p154 = scmp.eq.s32.totalorder %s33, 1
    %p155 = por %p153, %p154
    %p157 = scmp.ne.s32.totalorder %s142, %s156
    %p158 = scmp.eq.s32.totalorder %s33, 0
    %p159 = por %p157, %p158
    %s161 = sadd.s32 %s160, 1
    %p164 = scmp.eq.s32.totalorder %s27, 1
    %p165 = scmp.ne.s32.totalorder %s160, %s162
    %p166 = scmp.eq.s32.totalorder %s27, 0
    %p167 = por %p165, %p166
    %p168 = scmp.ne.s32.totalorder %s160, %s162
    %p169 = scmp.eq.s32.totalorder %s32, 1
    %p170 = por %p168, %p169
    %p171 = scmp.ne.s32.totalorder %s162, %s163
    %p172 = scmp.eq.s32.totalorder %s32, 0
    %p173 = por %p171, %p172
    %p174 = scmp.ne.s32.totalorder %s162, %s163
    %p175 = scmp.eq.s32.totalorder %s33, 1
    %p176 = por %p174, %p175
    %p178 = scmp.ne.s32.totalorder %s163, %s177
    %p179 = scmp.eq.s32.totalorder %s33, 0
    %p180 = por %p178, %p179
    %s182 = sadd.s32 %s181, 1
    %p185 = scmp.eq.s32.totalorder %s27, 1
    %p186 = scmp.ne.s32.totalorder %s181, %s183
    %p187 = scmp.eq.s32.totalorder %s27, 0
    %p188 = por %p186, %p187
    %p189 = scmp.ne.s32.totalorder %s181, %s183
    %p190 = scmp.eq.s32.totalorder %s32, 1
    %p191 = por %p189, %p190
    %p192 = scmp.ne.s32.totalorder %s183, %s184
    %p193 = scmp.eq.s32.totalorder %s32, 0
    %p194 = por %p192, %p193
    %p195 = scmp.ne.s32.totalorder %s183, %s184
    %p196 = scmp.eq.s32.totalorder %s33, 1
    %p197 = por %p195, %p196
    %p199 = scmp.ne.s32.totalorder %s184, %s198
    %p200 = scmp.eq.s32.totalorder %s33, 0
    %p201 = por %p199, %p200
    %s203 = sadd.s32 %s202, 1
    %p206 = scmp.eq.s32.totalorder %s27, 1
    %p207 = scmp.ne.s32.totalorder %s202, %s204
    %p208 = scmp.eq.s32.totalorder %s27, 0
    %p209 = por %p207, %p208
    %p210 = scmp.ne.s32.totalorder %s202, %s204
    %p211 = scmp.eq.s32.totalorder %s32, 1
    %p212 = por %p210, %p211
    %p213 = scmp.ne.s32.totalorder %s204, %s205
    %p214 = scmp.eq.s32.totalorder %s32, 0
    %p215 = por %p213, %p214
    %p216 = scmp.ne.s32.totalorder %s204, %s205
    %p217 = scmp.eq.s32.totalorder %s33, 1
    %p218 = por %p216, %p217
    %p220 = scmp.ne.s32.totalorder %s205, %s219
    %p221 = scmp.eq.s32.totalorder %s33, 0
    %p222 = por %p220, %p221
    %s224 = sadd.s32 %s223, 1
    %p227 = scmp.eq.s32.totalorder %s27, 1
    %p228 = scmp.ne.s32.totalorder %s223, %s225
    %p229 = scmp.eq.s32.totalorder %s27, 0
    %p230 = por %p228, %p229
    %p231 = scmp.ne.s32.totalorder %s223, %s225
    %p232 = scmp.eq.s32.totalorder %s32, 1
    %p233 = por %p231, %p232
    %p234 = scmp.ne.s32.totalorder %s225, %s226
    %p235 = scmp.eq.s32.totalorder %s32, 0
    %p236 = por %p234, %p235
    %p237 = scmp.ne.s32.totalorder %s225, %s226
    %p238 = scmp.eq.s32.totalorder %s33, 1
    %p239 = por %p237, %p238
    %p241 = scmp.ne.s32.totalorder %s226, %s240
    %p242 = scmp.eq.s32.totalorder %s33, 0
    %p243 = por %p241, %p242
    %s245 = sadd.s32 %s244, 1
    %p248 = scmp.eq.s32.totalorder %s27, 1
    %p249 = scmp.ne.s32.totalorder %s244, %s246
    %p250 = scmp.eq.s32.totalorder %s27, 0
    %p251 = por %p249, %p250
    %p252 = scmp.ne.s32.totalorder %s244, %s246
    %p253 = scmp.eq.s32.totalorder %s32, 1
    %p254 = por %p252, %p253
    %p255 = scmp.ne.s32.totalorder %s246, %s247
    %p256 = scmp.eq.s32.totalorder %s32, 0
    %p257 = por %p255, %p256
    %p258 = scmp.ne.s32.totalorder %s246, %s247
    %p259 = scmp.eq.s32.totalorder %s33, 1
    %p260 = por %p258, %p259
    %p262 = scmp.ne.s32.totalorder %s247, %s261
    %p263 = scmp.eq.s32.totalorder %s33, 0
    %p264 = por %p262, %p263
    %s266 = sadd.s32 %s265, 1
    %p269 = scmp.eq.s32.totalorder %s27, 1
    %p270 = scmp.ne.s32.totalorder %s265, %s267
    %p271 = scmp.eq.s32.totalorder %s27, 0
    %p272 = por %p270, %p271
    %p273 = scmp.ne.s32.totalorder %s265, %s267
    %p274 = scmp.eq.s32.totalorder %s32, 1
    %p275 = por %p273, %p274
    %p276 = scmp.ne.s32.totalorder %s267, %s268
    %p277 = scmp.eq.s32.totalorder %s32, 0
    %p278 = por %p276, %p277
    %p279 = scmp.ne.s32.totalorder %s267, %s268
    %p280 = scmp.eq.s32.totalorder %s33, 1
    %p281 = por %p279, %p280
    %p283 = scmp.ne.s32.totalorder %s268, %s282
    %p284 = scmp.eq.s32.totalorder %s33, 0
    %p285 = por %p283, %p284
    %s287 = sadd.s32 %s286, 1
    %p290 = scmp.eq.s32.totalorder %s27, 1
    %p291 = scmp.ne.s32.totalorder %s286, %s288
    %p292 = scmp.eq.s32.totalorder %s27, 0
    %p293 = por %p291, %p292
    %p294 = scmp.ne.s32.totalorder %s286, %s288
    %p295 = scmp.eq.s32.totalorder %s32, 1
    %p296 = por %p294, %p295
    %p297 = scmp.ne.s32.totalorder %s288, %s289
    %p298 = scmp.eq.s32.totalorder %s32, 0
    %p299 = por %p297, %p298
    %p300 = scmp.ne.s32.totalorder %s288, %s289
    %p301 = scmp.eq.s32.totalorder %s33, 1
    %p302 = por %p300, %p301
    %p304 = scmp.ne.s32.totalorder %s289, %s303
    %p305 = scmp.eq.s32.totalorder %s33, 0
    %p306 = por %p304, %p305
    %s308 = sadd.s32 %s307, 1
    %p311 = scmp.eq.s32.totalorder %s27, 1
    %p312 = scmp.ne.s32.totalorder %s307, %s309
    %p313 = scmp.eq.s32.totalorder %s27, 0
    %p314 = por %p312, %p313
    %p315 = scmp.ne.s32.totalorder %s307, %s309
    %p316 = scmp.eq.s32.totalorder %s32, 1
    %p317 = por %p315, %p316
    %p318 = scmp.ne.s32.totalorder %s309, %s310
    %p319 = scmp.eq.s32.totalorder %s32, 0
    %p320 = por %p318, %p319
    %p321 = scmp.ne.s32.totalorder %s309, %s310
    %p322 = scmp.eq.s32.totalorder %s33, 1
    %p323 = por %p321, %p322
    %p325 = scmp.ne.s32.totalorder %s310, %s324
    %p326 = scmp.eq.s32.totalorder %s33, 0
    %p327 = por %p325, %p326
    %s329 = sadd.s32 %s328, 1
    %p332 = scmp.eq.s32.totalorder %s27, 1
    %p333 = scmp.ne.s32.totalorder %s328, %s330
    %p334 = scmp.eq.s32.totalorder %s27, 0
    %p335 = por %p333, %p334
    %p336 = scmp.ne.s32.totalorder %s328, %s330
    %p337 = scmp.eq.s32.totalorder %s32, 1
    %p338 = por %p336, %p337
    %p339 = scmp.ne.s32.totalorder %s330, %s331
    %p340 = scmp.eq.s32.totalorder %s32, 0
    %p341 = por %p339, %p340
    %p342 = scmp.ne.s32.totalorder %s330, %s331
    %p343 = scmp.eq.s32.totalorder %s33, 1
    %p344 = por %p342, %p343
    %p346 = scmp.ne.s32.totalorder %s331, %s345
    %p347 = scmp.eq.s32.totalorder %s33, 0
    %p348 = por %p346, %p347
    %s350 = sadd.s32 %s349, 1
    %p353 = scmp.eq.s32.totalorder %s27, 1
    %p354 = scmp.ne.s32.totalorder %s349, %s351
    %p355 = scmp.eq.s32.totalorder %s27, 0
    %p356 = por %p354, %p355
    %p357 = scmp.ne.s32.totalorder %s349, %s351
    %p358 = scmp.eq.s32.totalorder %s32, 1
    %p359 = por %p357, %p358
    %p360 = scmp.ne.s32.totalorder %s351, %s352
    %p361 = scmp.eq.s32.totalorder %s32, 0
    %p362 = por %p360, %p361
    %p363 = scmp.ne.s32.totalorder %s351, %s352
    %p364 = scmp.eq.s32.totalorder %s33, 1
    %p365 = por %p363, %p364
    %p367 = scmp.ne.s32.totalorder %s352, %s366
    %p368 = scmp.eq.s32.totalorder %s33, 0
    %p369 = por %p367, %p368
    %s371 = sadd.s32 %s370, 1
    %p374 = scmp.eq.s32.totalorder %s27, 1
    %p375 = scmp.ne.s32.totalorder %s370, %s372
    %p376 = scmp.eq.s32.totalorder %s27, 0
    %p377 = por %p375, %p376
    %p378 = scmp.ne.s32.totalorder %s370, %s372
    %p379 = scmp.eq.s32.totalorder %s32, 1
    %p380 = por %p378, %p379
    %p381 = scmp.ne.s32.totalorder %s372, %s373
    %p382 = scmp.eq.s32.totalorder %s32, 0
    %p383 = por %p381, %p382
    %p384 = scmp.ne.s32.totalorder %s372, %s373
    %p385 = scmp.eq.s32.totalorder %s33, 1
    %p386 = por %p384, %p385
    %p388 = scmp.ne.s32.totalorder %s373, %s387
    %p389 = scmp.eq.s32.totalorder %s33, 0
    %p390 = por %p388, %p389
    %s392 = sadd.s32 %s391, 1
    %p395 = scmp.eq.s32.totalorder %s27, 1
    %p396 = scmp.ne.s32.totalorder %s391, %s393
    %p397 = scmp.eq.s32.totalorder %s27, 0
    %p398 = por %p396, %p397
    %p399 = scmp.ne.s32.totalorder %s391, %s393
    %p400 = scmp.eq.s32.totalorder %s32, 1
    %p401 = por %p399, %p400
    %p402 = scmp.ne.s32.totalorder %s393, %s394
    %p403 = scmp.eq.s32.totalorder %s32, 0
    %p404 = por %p402, %p403
    %p405 = scmp.ne.s32.totalorder %s393, %s394
    %p406 = scmp.eq.s32.totalorder %s33, 1
    %p407 = por %p405, %p406
    %p409 = scmp.ne.s32.totalorder %s394, %s408
    %p410 = scmp.eq.s32.totalorder %s33, 0
    %p411 = por %p409, %p410
    %s413 = sadd.s32 %s412, 1
    %p416 = scmp.eq.s32.totalorder %s27, 1
    %p417 = scmp.ne.s32.totalorder %s412, %s414
    %p418 = scmp.eq.s32.totalorder %s27, 0
    %p419 = por %p417, %p418
    %p420 = scmp.ne.s32.totalorder %s412, %s414
    %p421 = scmp.eq.s32.totalorder %s32, 1
    %p422 = por %p420, %p421
    %p423 = scmp.ne.s32.totalorder %s414, %s415
    %p424 = scmp.eq.s32.totalorder %s32, 0
    %p425 = por %p423, %p424
    %p426 = scmp.ne.s32.totalorder %s414, %s415
    %p427 = scmp.eq.s32.totalorder %s33, 1
    %p428 = por %p426, %p427
    %p430 = scmp.ne.s32.totalorder %s415, %s429
    %p431 = scmp.eq.s32.totalorder %s33, 0
    %p432 = por %p430, %p431
    %s434 = sadd.s32 %s433, 1
    %p437 = scmp.eq.s32.totalorder %s27, 1
    %p438 = scmp.ne.s32.totalorder %s433, %s435
    %p439 = scmp.eq.s32.totalorder %s27, 0
    %p440 = por %p438, %p439
    %p441 = scmp.ne.s32.totalorder %s433, %s435
    %p442 = scmp.eq.s32.totalorder %s32, 1
    %p443 = por %p441, %p442
    %p444 = scmp.ne.s32.totalorder %s435, %s436
    %p445 = scmp.eq.s32.totalorder %s32, 0
    %p446 = por %p444, %p445
    %p447 = scmp.ne.s32.totalorder %s435, %s436
    %p448 = scmp.eq.s32.totalorder %s33, 1
    %p449 = por %p447, %p448
    %p451 = scmp.ne.s32.totalorder %s436, %s450
    %p452 = scmp.eq.s32.totalorder %s33, 0
    %p453 = por %p451, %p452
    %s455 = sadd.s32 %s454, 1
    %p458 = scmp.eq.s32.totalorder %s27, 1
    %p459 = scmp.ne.s32.totalorder %s454, %s456
    %p460 = scmp.eq.s32.totalorder %s27, 0
    %p461 = por %p459, %p460
    %p462 = scmp.ne.s32.totalorder %s454, %s456
    %p463 = scmp.eq.s32.totalorder %s32, 1
    %p464 = por %p462, %p463
    %p465 = scmp.ne.s32.totalorder %s456, %s457
    %p466 = scmp.eq.s32.totalorder %s32, 0
    %p467 = por %p465, %p466
    %p468 = scmp.ne.s32.totalorder %s456, %s457
    %p469 = scmp.eq.s32.totalorder %s33, 1
    %p470 = por %p468, %p469
    %p472 = scmp.ne.s32.totalorder %s457, %s471
    %p473 = scmp.eq.s32.totalorder %s33, 0
    %p474 = por %p472, %p473
    %s476 = sadd.s32 %s475, 1
    %p479 = scmp.eq.s32.totalorder %s27, 1
    %p480 = scmp.ne.s32.totalorder %s475, %s477
    %p481 = scmp.eq.s32.totalorder %s27, 0
    %p482 = por %p480, %p481
    %p483 = scmp.ne.s32.totalorder %s475, %s477
    %p484 = scmp.eq.s32.totalorder %s32, 1
    %p485 = por %p483, %p484
    %p486 = scmp.ne.s32.totalorder %s477, %s478
    %p487 = scmp.eq.s32.totalorder %s32, 0
    %p488 = por %p486, %p487
    %p489 = scmp.ne.s32.totalorder %s477, %s478
    %p490 = scmp.eq.s32.totalorder %s33, 1
    %p491 = por %p489, %p490
    %p493 = scmp.ne.s32.totalorder %s478, %s492
    %p494 = scmp.eq.s32.totalorder %s33, 0
    %p495 = por %p493, %p494
    %s496 = ssub.s32 %s27, %s34
    %p497 = scmp.eq.s32.totalorder %s496, 0
    %s499 = sadd.s32 %s498, 1
    %s500 = scalar_select %p497, %s498, %s499
    %p503 = pneg %p497
    %p504 = scmp.eq.s32.totalorder %s27, 1
    %p505 = por %p503, %p504
    %p506 = scmp.ne.s32.totalorder %s498, %s501
    %p507 = scmp.eq.s32.totalorder %s27, 0
    %p508 = por %p506, %p507
    %p509 = scmp.ne.s32.totalorder %s498, %s501
    %p510 = scmp.eq.s32.totalorder %s32, 1
    %p511 = por %p509, %p510
    %p512 = scmp.ne.s32.totalorder %s501, %s502
    %p513 = scmp.eq.s32.totalorder %s32, 0
    %p514 = por %p512, %p513
    %p515 = scmp.ne.s32.totalorder %s501, %s502
    %p516 = scmp.eq.s32.totalorder %s33, 1
    %p517 = por %p515, %p516
    %p519 = scmp.ne.s32.totalorder %s502, %s518
    %p520 = scmp.eq.s32.totalorder %s33, 0
    %p521 = por %p519, %p520
    %p522 = scmp.le.s32.totalorder 1, %s27
    %p523 = scmp.lt.s32.totalorder %s27, 3
    %p524 = pnand %p522, %p523
    %p525 = pneg %p524
    // Predicated region
    $region9: #{tv_encoder_apply.1} parent=5 // pred_check
      _
    $region10: #{tv_encoder_apply.1} parent=5 // pred_check_branch
      %527 = sbr.rel (%p524) target = $region12
    $region11: #{tv_encoder_apply.1} parent=5 // pred_region
      %s528 = ssub.s32 %s27, 1
      // Predicated region
      $region13: #{tv_encoder_apply.1} parent=11 // pred_check
        %p529 = pneg %p152
      $region14: #{tv_encoder_apply.1} parent=11 // pred_check_branch
        %531 = sbr.rel (%p529) target = $region16
      $region15: #{tv_encoder_apply.1} parent=11 // pred_region
        _
      $region16: #{tv_encoder_apply.1} parent=11 // pred_fallthru
        _
      // Predicated region
      $region17: #{tv_encoder_apply.1} parent=11 // pred_check
        %p532 = pneg %p173
      $region18: #{tv_encoder_apply.1} parent=11 // pred_check_branch
        %534 = sbr.rel (%p532) target = $region20
      $region19: #{tv_encoder_apply.1} parent=11 // pred_region
        _
      $region20: #{tv_encoder_apply.1} parent=11 // pred_fallthru
        _
      // Predicated region
      $region21: #{tv_encoder_apply.1} parent=11 // pred_check
        %p535 = pneg %p194
      $region22: #{tv_encoder_apply.1} parent=11 // pred_check_branch
        %537 = sbr.rel (%p535) target = $region24
      $region23: #{tv_encoder_apply.1} parent=11 // pred_region
        _
      $region24: #{tv_encoder_apply.1} parent=11 // pred_fallthru
        _
      // Predicated region
      $region25: #{tv_encoder_apply.1} parent=11 // pred_check
        %p538 = pneg %p215
      $region26: #{tv_encoder_apply.1} parent=11 // pred_check_branch
        %540 = sbr.rel (%p538) target = $region28
      $region27: #{tv_encoder_apply.1} parent=11 // pred_region
        _
      $region28: #{tv_encoder_apply.1} parent=11 // pred_fallthru
        _
      // Predicated region
      $region29: #{tv_encoder_apply.1} parent=11 // pred_check
        %p541 = pneg %p236
      $region30: #{tv_encoder_apply.1} parent=11 // pred_check_branch
        %543 = sbr.rel (%p541) target = $region32
      $region31: #{tv_encoder_apply.1} parent=11 // pred_region
        _
      $region32: #{tv_encoder_apply.1} parent=11 // pred_fallthru
        _
      // Predicated region
      $region33: #{tv_encoder_apply.1} parent=11 // pred_check
        %p544 = pneg %p257
      $region34: #{tv_encoder_apply.1} parent=11 // pred_check_branch
        %546 = sbr.rel (%p544) target = $region36
      $region35: #{tv_encoder_apply.1} parent=11 // pred_region
        _
      $region36: #{tv_encoder_apply.1} parent=11 // pred_fallthru
        _
      // Predicated region
      $region37: #{tv_encoder_apply.1} parent=11 // pred_check
        %p547 = pneg %p278
      $region38: #{tv_encoder_apply.1} parent=11 // pred_check_branch
        %549 = sbr.rel (%p547) target = $region40
      $region39: #{tv_encoder_apply.1} parent=11 // pred_region
        _
      $region40: #{tv_encoder_apply.1} parent=11 // pred_fallthru
        _
      // Predicated region
      $region41: #{tv_encoder_apply.1} parent=11 // pred_check
        %p550 = pneg %p299
      $region42: #{tv_encoder_apply.1} parent=11 // pred_check_branch
        %552 = sbr.rel (%p550) target = $region44
      $region43: #{tv_encoder_apply.1} parent=11 // pred_region
        _
      $region44: #{tv_encoder_apply.1} parent=11 // pred_fallthru
        _
      // Predicated region
      $region45: #{tv_encoder_apply.1} parent=11 // pred_check
        %p553 = pneg %p320
      $region46: #{tv_encoder_apply.1} parent=11 // pred_check_branch
        %555 = sbr.rel (%p553) target = $region48
      $region47: #{tv_encoder_apply.1} parent=11 // pred_region
        _
      $region48: #{tv_encoder_apply.1} parent=11 // pred_fallthru
        _
      // Predicated region
      $region49: #{tv_encoder_apply.1} parent=11 // pred_check
        %p556 = pneg %p341
      $region50: #{tv_encoder_apply.1} parent=11 // pred_check_branch
        %558 = sbr.rel (%p556) target = $region52
      $region51: #{tv_encoder_apply.1} parent=11 // pred_region
        _
      $region52: #{tv_encoder_apply.1} parent=11 // pred_fallthru
        _
      // Predicated region
      $region53: #{tv_encoder_apply.1} parent=11 // pred_check
        %p559 = pneg %p362
      $region54: #{tv_encoder_apply.1} parent=11 // pred_check_branch
        %561 = sbr.rel (%p559) target = $region56
      $region55: #{tv_encoder_apply.1} parent=11 // pred_region
        _
      $region56: #{tv_encoder_apply.1} parent=11 // pred_fallthru
        _
      // Predicated region
      $region57: #{tv_encoder_apply.1} parent=11 // pred_check
        %p562 = pneg %p383
      $region58: #{tv_encoder_apply.1} parent=11 // pred_check_branch
        %564 = sbr.rel (%p562) target = $region60
      $region59: #{tv_encoder_apply.1} parent=11 // pred_region
        _
      $region60: #{tv_encoder_apply.1} parent=11 // pred_fallthru
        _
      // Predicated region
      $region61: #{tv_encoder_apply.1} parent=11 // pred_check
        %p565 = pneg %p404
      $region62: #{tv_encoder_apply.1} parent=11 // pred_check_branch
        %567 = sbr.rel (%p565) target = $region64
      $region63: #{tv_encoder_apply.1} parent=11 // pred_region
        _
      $region64: #{tv_encoder_apply.1} parent=11 // pred_fallthru
        _
      // Predicated region
      $region65: #{tv_encoder_apply.1} parent=11 // pred_check
        %p568 = pneg %p425
      $region66: #{tv_encoder_apply.1} parent=11 // pred_check_branch
        %570 = sbr.rel (%p568) target = $region68
      $region67: #{tv_encoder_apply.1} parent=11 // pred_region
        _
      $region68: #{tv_encoder_apply.1} parent=11 // pred_fallthru
        _
      // Predicated region
      $region69: #{tv_encoder_apply.1} parent=11 // pred_check
        %p571 = pneg %p446
      $region70: #{tv_encoder_apply.1} parent=11 // pred_check_branch
        %573 = sbr.rel (%p571) target = $region72
      $region71: #{tv_encoder_apply.1} parent=11 // pred_region
        _
      $region72: #{tv_encoder_apply.1} parent=11 // pred_fallthru
        _
      // Predicated region
      $region73: #{tv_encoder_apply.1} parent=11 // pred_check
        %p574 = pneg %p467
      $region74: #{tv_encoder_apply.1} parent=11 // pred_check_branch
        %576 = sbr.rel (%p574) target = $region76
      $region75: #{tv_encoder_apply.1} parent=11 // pred_region
        _
      $region76: #{tv_encoder_apply.1} parent=11 // pred_fallthru
        _
      // Predicated region
      $region77: #{tv_encoder_apply.1} parent=11 // pred_check
        %p577 = pneg %p488
      $region78: #{tv_encoder_apply.1} parent=11 // pred_check_branch
        %579 = sbr.rel (%p577) target = $region80
      $region79: #{tv_encoder_apply.1} parent=11 // pred_region
        _
      $region80: #{tv_encoder_apply.1} parent=11 // pred_fallthru
        _
    $region12: #{tv_encoder_apply.1} parent=5 // pred_fallthru
      _
    %p580 = scmp.lt.s32.totalorder %s27, 2
    // Predicated region
    $region81: #{tv_encoder_apply.1} parent=5 // pred_check
      %p581 = pneg %p580
    $region82: #{tv_encoder_apply.1} parent=5 // pred_check_branch
      %583 = sbr.rel (%p581) target = $region84
    $region83: #{tv_encoder_apply.1} parent=5 // pred_region
      // Predicated region
      $region85: #{tv_encoder_apply.1} parent=83 // pred_check
        %p584 = pneg %p47
      $region86: #{tv_encoder_apply.1} parent=83 // pred_check_branch
        %586 = sbr.rel (%p584) target = $region88
      $region87: #{tv_encoder_apply.1} parent=83 // pred_region
        %p587 = scmp.lt.s32.totalorder %s27, 1
        %s588 = scalar_select %p587, %s27, 1
        %s589 = smul.addr %s588, 8
        %s590 = scalar_lea.vmem %s0, %s589
      $region88: #{tv_encoder_apply.1} parent=83 // pred_fallthru
        _
      // Predicated region
      $region89: #{tv_encoder_apply.1} parent=83 // pred_check
        %p591 = pneg %p73
      $region90: #{tv_encoder_apply.1} parent=83 // pred_check_branch
        %593 = sbr.rel (%p591) target = $region92
      $region91: #{tv_encoder_apply.1} parent=83 // pred_region
        %p594 = scmp.lt.s32.totalorder %s27, 1
        %s595 = scalar_select %p594, %s27, 1
        %s596 = smul.addr %s595, 8
        %s597 = scalar_lea.vmem %s1, %s596
      $region92: #{tv_encoder_apply.1} parent=83 // pred_fallthru
        _
      // Predicated region
      $region93: #{tv_encoder_apply.1} parent=83 // pred_check
        %p598 = pneg %p99
      $region94: #{tv_encoder_apply.1} parent=83 // pred_check_branch
        %600 = sbr.rel (%p598) target = $region96
      $region95: #{tv_encoder_apply.1} parent=83 // pred_region
        %p601 = scmp.lt.s32.totalorder %s27, 1
        %s602 = scalar_select %p601, %s27, 1
        %s603 = smul.addr %s602, 8
        %s604 = scalar_lea.vmem %s2, %s603
      $region96: #{tv_encoder_apply.1} parent=83 // pred_fallthru
        _
      // Predicated region
      $region97: #{tv_encoder_apply.1} parent=83 // pred_check
        %p605 = pneg %p125
      $region98: #{tv_encoder_apply.1} parent=83 // pred_check_branch
        %607 = sbr.rel (%p605) target = $region100
      $region99: #{tv_encoder_apply.1} parent=83 // pred_region
        %p608 = scmp.lt.s32.totalorder %s27, 1
        %s609 = scalar_select %p608, %s27, 1
        %s610 = smul.addr %s609, 8
        %s611 = scalar_lea.vmem %s3, %s610
      $region100: #{tv_encoder_apply.1} parent=83 // pred_fallthru
        _
    $region84: #{tv_encoder_apply.1} parent=5 // pred_fallthru
      _
    %p612 = scmp.le.s32.totalorder 1, %s27
    %p613 = scmp.lt.s32.totalorder %s27, 3
    %p614 = pnand %p612, %p613
    %p615 = pneg %p614
    // Predicated region
    $region101: #{tv_encoder_apply.1} parent=5 // pred_check
      _
    $region102: #{tv_encoder_apply.1} parent=5 // pred_check_branch
      %617 = sbr.rel (%p614) target = $region104
    $region103: #{tv_encoder_apply.1} parent=5 // pred_region
      %s618 = ssub.s32 %s27, 1
      %p619 = scmp.lt.s32.totalorder %s32, 1
      %s620 = scalar_select %p619, %s32, 1
      %s621 = smul.addr %s620, 8
      %s622 = scalar_lea.vmem %s0, %s621
      %p623 = pneg %p53
      %p624 = pneg %p50
      %p625 = scmp.lt.s32.totalorder %s32, 1
      %s626 = scalar_select %p625, %s32, 1
      %s627 = smul.addr %s626, 8
      %s628 = scalar_lea.vmem %s1, %s627
      %p629 = pneg %p79
      %p630 = pneg %p76
      %p631 = scmp.lt.s32.totalorder %s32, 1
      %s632 = scalar_select %p631, %s32, 1
      %s633 = smul.addr %s632, 8
      %s634 = scalar_lea.vmem %s2, %s633
      %p635 = pneg %p105
      %p636 = pneg %p102
      %p637 = scmp.lt.s32.totalorder %s32, 1
      %s638 = scalar_select %p637, %s32, 1
      %s639 = smul.addr %s638, 8
      %s640 = scalar_lea.vmem %s3, %s639
      %p641 = pneg %p131
      %p642 = pneg %p128
      %p643 = pneg %p152
      %p644 = pneg %p149
      %p645 = pneg %p173
      %p646 = pneg %p170
      %p647 = pneg %p194
      %p648 = pneg %p191
      %p649 = pneg %p215
      %p650 = pneg %p212
      %p651 = pneg %p236
      %p652 = pneg %p233
      %p653 = pneg %p257
      %p654 = pneg %p254
      %p655 = pneg %p278
      %p656 = pneg %p275
      %p657 = pneg %p299
      %p658 = pneg %p296
      %p659 = pneg %p320
      %p660 = pneg %p317
      %p661 = pneg %p341
      %p662 = pneg %p338
      %p663 = pneg %p362
      %p664 = pneg %p359
      %p665 = pneg %p383
      %p666 = pneg %p380
      %p667 = pneg %p404
      %p668 = pneg %p401
      %p669 = pneg %p425
      %p670 = pneg %p422
      %p671 = pneg %p446
      %p672 = pneg %p443
      %p673 = pneg %p467
      %p674 = pneg %p464
      %p675 = pneg %p488
      %p676 = pneg %p485
      %p677 = pneg %p514
      %p678 = pneg %p511
      %p679 = scmp.lt.s32.totalorder %s32, 1
      %s680 = scalar_select %p679, %s32, 1
      %s681 = smul.addr %s680, 8
      %s682 = scalar_lea.vmem %s21, %s681
      %p683 = scmp.lt.s32.totalorder %s32, 1
      %s684 = scalar_select %p683, %s32, 1
      %s685 = smul.addr %s684, 8
      %s686 = scalar_lea.vmem %s0, %s685
      %p687 = scmp.lt.s32.totalorder %s32, 1
      %s688 = scalar_select %p687, %s32, 1
      %s689 = smul.addr %s688, 8
      %s690 = scalar_lea.vmem %s1, %s689
      %p691 = scmp.lt.s32.totalorder %s32, 1
      %s692 = scalar_select %p691, %s32, 1
      %s693 = smul.addr %s692, 8
      %s694 = scalar_lea.vmem %s2, %s693
      %p695 = scmp.lt.s32.totalorder %s32, 1
      %s696 = scalar_select %p695, %s32, 1
      %s697 = smul.addr %s696, 8
      %s698 = scalar_lea.vmem %s3, %s697
      %p699 = scmp.lt.s32.totalorder %s32, 1
      %s700 = scalar_select %p699, %s32, 1
      %s701 = smul.addr %s700, 8
      %s702 = scalar_lea.vmem %s21, %s701
      %v703 = vlaneseq
      %v704 = vand.u32 %v703, 127
      %v705 = vld [vmem:[%s686] sm:$0xff]
      %v706 = vld [vmem:[%s690] sm:$0xff]
      %707 = vset.pattern.permute.xlu0 0
      %708 = vperm.xlu0 %707, %v705
      %v709 = vpop.permute.xlu0 %708
      %vm710 = vcmp.eq.s32.totalorder %v709, %v704
      %v711 = vsel %vm710, 1, 0
      %v712 = vcvt.s32.f32 %v711
      %714 = vset.pattern.permute.xlu0 0
      %715 = vperm.xlu0 %714, %v706
      %v716 = vpop.permute.xlu0 %715
      %v718 = vmul.f32 %v712, %v716
      %719 = vset.pattern.permute.xlu0 1
      %720 = vperm.xlu0 %719, %v705
      %v721 = vpop.permute.xlu0 %720
      %vm722 = vcmp.eq.s32.totalorder %v721, %v704
      %v723 = vsel %vm722, 1, 0
      %v724 = vcvt.s32.f32 %v723
      %725 = vset.pattern.permute.xlu0 1
      %726 = vperm.xlu0 %725, %v706
      %v727 = vpop.permute.xlu0 %726
      %v729 = vmul.f32 %v724, %v727
      %v730 = vadd.f32 %v718, %v729
      %731 = vset.pattern.permute.xlu0 2
      %732 = vperm.xlu0 %731, %v705
      %v733 = vpop.permute.xlu0 %732
      %vm734 = vcmp.eq.s32.totalorder %v733, %v704
      %v735 = vsel %vm734, 1, 0
      %v736 = vcvt.s32.f32 %v735
      %737 = vset.pattern.permute.xlu0 2
      %738 = vperm.xlu0 %737, %v706
      %v739 = vpop.permute.xlu0 %738
      %v741 = vmul.f32 %v736, %v739
      %v742 = vadd.f32 %v730, %v741
      %743 = vset.pattern.permute.xlu0 3
      %744 = vperm.xlu0 %743, %v705
      %v745 = vpop.permute.xlu0 %744
      %vm746 = vcmp.eq.s32.totalorder %v745, %v704
      %v747 = vsel %vm746, 1, 0
      %v748 = vcvt.s32.f32 %v747
      %749 = vset.pattern.permute.xlu0 3
      %750 = vperm.xlu0 %749, %v706
      %v751 = vpop.permute.xlu0 %750
      %v753 = vmul.f32 %v748, %v751
      %v754 = vadd.f32 %v742, %v753
      %755 = vset.pattern.permute.xlu0 4
      %756 = vperm.xlu0 %755, %v705
      %v757 = vpop.permute.xlu0 %756
      %vm758 = vcmp.eq.s32.totalorder %v757, %v704
      %v759 = vsel %vm758, 1, 0
      %v760 = vcvt.s32.f32 %v759
      %761 = vset.pattern.permute.xlu0 4
      %762 = vperm.xlu0 %761, %v706
      %v763 = vpop.permute.xlu0 %762
      %v765 = vmul.f32 %v760, %v763
      %v766 = vadd.f32 %v754, %v765
      %767 = vset.pattern.permute.xlu0 5
      %768 = vperm.xlu0 %767, %v705
      %v769 = vpop.permute.xlu0 %768
      %vm770 = vcmp.eq.s32.totalorder %v769, %v704
      %v771 = vsel %vm770, 1, 0
      %v772 = vcvt.s32.f32 %v771
      %773 = vset.pattern.permute.xlu0 5
      %774 = vperm.xlu0 %773, %v706
      %v775 = vpop.permute.xlu0 %774
      %v777 = vmul.f32 %v772, %v775
      %v778 = vadd.f32 %v766, %v777
      %779 = vset.pattern.permute.xlu0 6
      %780 = vperm.xlu0 %779, %v705
      %v781 = vpop.permute.xlu0 %780
      %vm782 = vcmp.eq.s32.totalorder %v781, %v704
      %v783 = vsel %vm782, 1, 0
      %v784 = vcvt.s32.f32 %v783
      %785 = vset.pattern.permute.xlu0 6
      %786 = vperm.xlu0 %785, %v706
      %v787 = vpop.permute.xlu0 %786
      %v789 = vmul.f32 %v784, %v787
      %v790 = vadd.f32 %v778, %v789
      %791 = vset.pattern.permute.xlu0 7
      %792 = vperm.xlu0 %791, %v705
      %v793 = vpop.permute.xlu0 %792
      %vm794 = vcmp.eq.s32.totalorder %v793, %v704
      %v795 = vsel %vm794, 1, 0
      %v796 = vcvt.s32.f32 %v795
      %797 = vset.pattern.permute.xlu0 7
      %798 = vperm.xlu0 %797, %v706
      %v799 = vpop.permute.xlu0 %798
      %v801 = vmul.f32 %v796, %v799
      %v802 = vadd.f32 %v790, %v801
      %vm803 = vcmask 64512
      %v804 = vsel %vm803, %v706, 0.0
      %805 = vadd.xlane.f32.xlu0 %v804
      %v806 = vpop.xlane.xlu0 %805
      %v807 = vmax.f32 %v806, 1e-09
      %v808 = vrcp.pop %v807
      %v809 = vmul.f32 1.0, %v808
      %v810 = vmul.f32 %v802, %v809
      %v811 = vld [vmem:[%s694] sm:$0xff]
      %812 = vset.pattern.permute.xlu0 0
      %813 = vperm.xlu0 %812, %v811
      %v814 = vpop.permute.xlu0 %813
      %vm815 = vcmp.eq.s32.totalorder %v814, %v704
      %v816 = vsel %vm815, 1, 0
      %v817 = vcvt.s32.f32 %v816
      %v818 = vmul.f32 %v817, 0.33333334
      %v819 = vadd.f32 %v810, %v818
      %820 = vset.pattern.permute.xlu0 1
      %821 = vperm.xlu0 %820, %v811
      %v822 = vpop.permute.xlu0 %821
      %vm823 = vcmp.eq.s32.totalorder %v822, %v704
      %v824 = vsel %vm823, 1, 0
      %v825 = vcvt.s32.f32 %v824
      %v826 = vmul.f32 %v825, 0.33333334
      %v827 = vadd.f32 %v819, %v826
      %828 = vset.pattern.permute.xlu0 2
      %829 = vperm.xlu0 %828, %v811
      %v830 = vpop.permute.xlu0 %829
      %vm831 = vcmp.eq.s32.totalorder %v830, %v704
      %v832 = vsel %vm831, 1, 0
      %v833 = vcvt.s32.f32 %v832
      %v834 = vmul.f32 %v833, 0.33333334
      %v835 = vadd.f32 %v827, %v834
      %836 = vset.pattern.permute.xlu0 3
      %837 = vperm.xlu0 %836, %v811
      %v838 = vpop.permute.xlu0 %837
      %vm839 = vcmp.eq.s32.totalorder %v838, %v704
      %v840 = vsel %vm839, 1, 0
      %v841 = vcvt.s32.f32 %v840
      %v842 = vadd.f32 %v835, %v841
      %v843 = vld [vmem:[%s698] sm:$0xff]
      %v844 = vld [vmem:[%s5] sm:$0xff]
      %v845 = vld [vmem:[%s5 + $0x8] sm:$0xff]
      %v846 = vld [vmem:[%s6] sm:$0x1]
      %v848 = vlaneseq
      %v849 = vshrl.u32 %v848, 7
      %v850 = vsub.s32 0, %v849
      %v851 = vrot.slane %v846, %v850
      %vm853 = vcmask 130048
      %v855 = vsel %vm853, %v843, 0
      %857 = vmatprep.subr.mxu0 0.0
      %858 = vmatpush1.msra.mxu0 %v844
      %859 = vmatprep.subr.mxu0 0.0
      %860 = vmatpush1.msra.mxu0 %v845
      %861 = vmatprep.subr.mxu0 0.0
      %862 = vmatpush1.msra.mxu0 0.0
      %863 = vmatprep.subr.mxu0 0.0
      %864 = vmatpush1.msra.mxu0 0.0
      %865 = vmatprep.subr.mxu0 0.0
      %866 = vmatpush1.msra.mxu0 0.0
      %867 = vmatprep.subr.mxu0 0.0
      %868 = vmatpush1.msra.mxu0 0.0
      %869 = vmatprep.subr.mxu0 0.0
      %870 = vmatpush1.msra.mxu0 0.0
      %871 = vmatprep.subr.mxu0 0.0
      %872 = vmatpush1.msra.mxu0 0.0
      %873 = vmatprep.subr.mxu0 0.0
      %874 = vmatpush1.msra.mxu0 0.0
      %875 = vmatprep.subr.mxu0 0.0
      %876 = vmatpush1.msra.mxu0 0.0
      %877 = vmatprep.subr.mxu0 0.0
      %878 = vmatpush1.msra.mxu0 0.0
      %879 = vmatprep.subr.mxu0 0.0
      %880 = vmatpush1.msra.mxu0 0.0
      %881 = vmatprep.subr.mxu0 0.0
      %882 = vmatpush1.msra.mxu0 0.0
      %883 = vmatprep.subr.mxu0 0.0
      %884 = vmatpush1.msra.mxu0 0.0
      %885 = vmatprep.subr.mxu0 0.0
      %886 = vmatpush1.msra.mxu0 0.0
      %887 = vmatprep.subr.mxu0 0.0
      %888 = vmatpush1.msra.mxu0 0.0
      %889 = vmatprep.subr.mxu0 0.0
      %890 = vmatpush1.msra.mxu0 0.0
      %891 = vmatprep.subr.mxu0 0.0
      %892 = vmatpush1.msra.mxu0 0.0
      %893 = vmatprep.subr.mxu0 0.0
      %894 = vmatpush1.msra.mxu0 0.0
      %895 = vmatprep.subr.mxu0 0.0
      %896 = vmatpush1.msra.mxu0 0.0
      %897 = vmatprep.subr.mxu0 0.0
      %898 = vmatpush1.msra.mxu0 0.0
      %899 = vmatprep.subr.mxu0 0.0
      %900 = vmatpush1.msra.mxu0 0.0
      %901 = vmatprep.subr.mxu0 0.0
      %902 = vmatpush1.msra.mxu0 0.0
      %903 = vmatprep.subr.mxu0 0.0
      %904 = vmatpush1.msra.mxu0 0.0
      %905 = vmatprep.subr.mxu0 0.0
      %906 = vmatpush1.msra.mxu0 0.0
      %907 = vmatprep.subr.mxu0 0.0
      %908 = vmatpush1.msra.mxu0 0.0
      %909 = vmatprep.subr.mxu0 0.0
      %910 = vmatpush1.msra.mxu0 0.0
      %911 = vmatprep.subr.mxu0 0.0
      %912 = vmatpush1.msra.mxu0 0.0
      %913 = vmatprep.subr.mxu0 0.0
      %914 = vmatpush1.msra.mxu0 0.0
      %915 = vmatprep.subr.mxu0 0.0
      %916 = vmatpush1.msra.mxu0 0.0
      %917 = vmatprep.subr.mxu0 0.0
      %918 = vmatpush1.msra.mxu0 0.0
      %919 = vmatprep.subr.mxu0 0.0
      %920 = vmatpush1.msra.mxu0 0.0
      %921 = vmatprep.mubr.f32.mxu0 0.0
      %922 = vmatmul.mubr.f32.gmra.mrb[0].mxu0 %v855
      %v923 = vpop.f32.mrb[0].mxu0
      %v924 = vadd.f32 %v851, %v923
      %v925 = vpop.f32.mrb[0].mxu0
      %926 = vdwg.mxu0
      %v927 = vmul.f32 %v924, %v924
      %v928 = vmul.f32 %v924, %v927
      %v929 = vmul.f32 %v928, 0.044715
      %v930 = vadd.f32 %v924, %v929
      %v931 = vmul.f32 %v930, 0.7978846
      %v932 = vtanh.pop %v931
      %v933 = vadd.f32 %v932, 1.0
      %v934 = vmul.f32 %v933, 0.5
      %v935 = vmul.f32 %v924, %v934
      %v936 = vld [vmem:[%s4] sm:$0xff]
      %v937 = vld [vmem:[%s4 + $0x8] sm:$0xff]
      %v938 = vld [vmem:[%s4 + $0x10] sm:$0xff]
      %v939 = vld [vmem:[%s4 + $0x18] sm:$0xff]
      %v940 = vld [vmem:[%s4 + $0x20] sm:$0xff]
      %v941 = vld [vmem:[%s4 + $0x28] sm:$0xff]
      %v942 = vld [vmem:[%s4 + $0x30] sm:$0xff]
      %v943 = vld [vmem:[%s4 + $0x38] sm:$0xff]
      %v944 = vld [vmem:[%s4 + $0x40] sm:$0xff]
      %v945 = vld [vmem:[%s4 + $0x48] sm:$0xff]
      %v946 = vld [vmem:[%s4 + $0x50] sm:$0xff]
      %v947 = vld [vmem:[%s4 + $0x58] sm:$0xff]
      %v948 = vld [vmem:[%s4 + $0x60] sm:$0xff]
      %v949 = vld [vmem:[%s4 + $0x68] sm:$0xff]
      %v950 = vld [vmem:[%s4 + $0x70] sm:$0xff]
      %v951 = vld [vmem:[%s4 + $0x78] sm:$0xff]
      %v952 = vld [vmem:[%s8] sm:$0x1]
      %v954 = vlaneseq
      %v955 = vshrl.u32 %v954, 7
      %v956 = vsub.s32 0, %v955
      %v957 = vrot.slane %v952, %v956
      %959 = vmatprep.subr.mxu0 0.0
      %960 = vmatpush1.msra.mxu0 %v936
      %961 = vmatprep.subr.mxu0 0.0
      %962 = vmatpush1.msra.mxu0 %v937
      %963 = vmatprep.subr.mxu0 0.0
      %964 = vmatpush1.msra.mxu0 %v938
      %965 = vmatprep.subr.mxu0 0.0
      %966 = vmatpush1.msra.mxu0 %v939
      %967 = vmatprep.subr.mxu0 0.0
      %968 = vmatpush1.msra.mxu0 %v940
      %969 = vmatprep.subr.mxu0 0.0
      %970 = vmatpush1.msra.mxu0 %v941
      %971 = vmatprep.subr.mxu0 0.0
      %972 = vmatpush1.msra.mxu0 %v942
      %973 = vmatprep.subr.mxu0 0.0
      %974 = vmatpush1.msra.mxu0 %v943
      %975 = vmatprep.subr.mxu0 0.0
      %976 = vmatpush1.msra.mxu0 %v944
      %977 = vmatprep.subr.mxu0 0.0
      %978 = vmatpush1.msra.mxu0 %v945
      %979 = vmatprep.subr.mxu0 0.0
      %980 = vmatpush1.msra.mxu0 %v946
      %981 = vmatprep.subr.mxu0 0.0
      %982 = vmatpush1.msra.mxu0 %v947
      %983 = vmatprep.subr.mxu0 0.0
      %984 = vmatpush1.msra.mxu0 %v948
      %985 = vmatprep.subr.mxu0 0.0
      %986 = vmatpush1.msra.mxu0 %v949
      %987 = vmatprep.subr.mxu0 0.0
      %988 = vmatpush1.msra.mxu0 %v950
      %989 = vmatprep.subr.mxu0 0.0
      %990 = vmatpush1.msra.mxu0 %v951
      %991 = vmatprep.subr.mxu0 0.0
      %992 = vmatpush1.msra.mxu0 0.0
      %993 = vmatprep.subr.mxu0 0.0
      %994 = vmatpush1.msra.mxu0 0.0
      %995 = vmatprep.subr.mxu0 0.0
      %996 = vmatpush1.msra.mxu0 0.0
      %997 = vmatprep.subr.mxu0 0.0
      %998 = vmatpush1.msra.mxu0 0.0
      %999 = vmatprep.subr.mxu0 0.0
      %1000 = vmatpush1.msra.mxu0 0.0
      %1001 = vmatprep.subr.mxu0 0.0
      %1002 = vmatpush1.msra.mxu0 0.0
      %1003 = vmatprep.subr.mxu0 0.0
      %1004 = vmatpush1.msra.mxu0 0.0
      %1005 = vmatprep.subr.mxu0 0.0
      %1006 = vmatpush1.msra.mxu0 0.0
      %1007 = vmatprep.subr.mxu0 0.0
      %1008 = vmatpush1.msra.mxu0 0.0
      %1009 = vmatprep.subr.mxu0 0.0
      %1010 = vmatpush1.msra.mxu0 0.0
      %1011 = vmatprep.subr.mxu0 0.0
      %1012 = vmatpush1.msra.mxu0 0.0
      %1013 = vmatprep.subr.mxu0 0.0
      %1014 = vmatpush1.msra.mxu0 0.0
      %1015 = vmatprep.subr.mxu0 0.0
      %1016 = vmatpush1.msra.mxu0 0.0
      %1017 = vmatprep.subr.mxu0 0.0
      %1018 = vmatpush1.msra.mxu0 0.0
      %1019 = vmatprep.subr.mxu0 0.0
      %1020 = vmatpush1.msra.mxu0 0.0
      %1021 = vmatprep.subr.mxu0 0.0
      %1022 = vmatpush1.msra.mxu0 0.0
      %1023 = vmatprep.mubr.f32.mxu0 0.0
      %1024 = vmatmul.mubr.f32.gmra.mrb[0].mxu0 %v842
      %v1025 = vpop.f32.mrb[0].mxu0
      %v1026 = vadd.f32 %v957, %v1025
      %v1027 = vpop.f32.mrb[0].mxu0
      %1028 = vdwg.mxu0
      %v1029 = vld [vmem:[%s7] sm:$0xff]
      %v1030 = vld [vmem:[%s7 + $0x8] sm:$0xff]
      %v1032 = vsel %vm853, %v935, 0
      %1034 = vmatprep.subr.mxu0 0.0
      %1035 = vmatpush1.msra.mxu0 %v1029
      %1036 = vmatprep.subr.mxu0 0.0
      %1037 = vmatpush1.msra.mxu0 %v1030
      %1038 = vmatprep.subr.mxu0 0.0
      %1039 = vmatpush1.msra.mxu0 0.0
      %1040 = vmatprep.subr.mxu0 0.0
      %1041 = vmatpush1.msra.mxu0 0.0
      %1042 = vmatprep.subr.mxu0 0.0
      %1043 = vmatpush1.msra.mxu0 0.0
      %1044 = vmatprep.subr.mxu0 0.0
      %1045 = vmatpush1.msra.mxu0 0.0
      %1046 = vmatprep.subr.mxu0 0.0
      %1047 = vmatpush1.msra.mxu0 0.0
      %1048 = vmatprep.subr.mxu0 0.0
      %1049 = vmatpush1.msra.mxu0 0.0
      %1050 = vmatprep.subr.mxu0 0.0
      %1051 = vmatpush1.msra.mxu0 0.0
      %1052 = vmatprep.subr.mxu0 0.0
      %1053 = vmatpush1.msra.mxu0 0.0
      %1054 = vmatprep.subr.mxu0 0.0
      %1055 = vmatpush1.msra.mxu0 0.0
      %1056 = vmatprep.subr.mxu0 0.0
      %1057 = vmatpush1.msra.mxu0 0.0
      %1058 = vmatprep.subr.mxu0 0.0
      %1059 = vmatpush1.msra.mxu0 0.0
      %1060 = vmatprep.subr.mxu0 0.0
      %1061 = vmatpush1.msra.mxu0 0.0
      %1062 = vmatprep.subr.mxu0 0.0
      %1063 = vmatpush1.msra.mxu0 0.0
      %1064 = vmatprep.subr.mxu0 0.0
      %1065 = vmatpush1.msra.mxu0 0.0
      %1066 = vmatprep.subr.mxu0 0.0
      %1067 = vmatpush1.msra.mxu0 0.0
      %1068 = vmatprep.subr.mxu0 0.0
      %1069 = vmatpush1.msra.mxu0 0.0
      %1070 = vmatprep.subr.mxu0 0.0
      %1071 = vmatpush1.msra.mxu0 0.0
      %1072 = vmatprep.subr.mxu0 0.0
      %1073 = vmatpush1.msra.mxu0 0.0
      %1074 = vmatprep.subr.mxu0 0.0
      %1075 = vmatpush1.msra.mxu0 0.0
      %1076 = vmatprep.subr.mxu0 0.0
      %1077 = vmatpush1.msra.mxu0 0.0
      %1078 = vmatprep.subr.mxu0 0.0
      %1079 = vmatpush1.msra.mxu0 0.0
      %1080 = vmatprep.subr.mxu0 0.0
      %1081 = vmatpush1.msra.mxu0 0.0
      %1082 = vmatprep.subr.mxu0 0.0
      %1083 = vmatpush1.msra.mxu0 0.0
      %1084 = vmatprep.subr.mxu0 0.0
      %1085 = vmatpush1.msra.mxu0 0.0
      %1086 = vmatprep.subr.mxu0 0.0
      %1087 = vmatpush1.msra.mxu0 0.0
      %1088 = vmatprep.subr.mxu0 0.0
      %1089 = vmatpush1.msra.mxu0 0.0
      %1090 = vmatprep.subr.mxu0 0.0
      %1091 = vmatpush1.msra.mxu0 0.0
      %1092 = vmatprep.subr.mxu0 0.0
      %1093 = vmatpush1.msra.mxu0 0.0
      %1094 = vmatprep.subr.mxu0 0.0
      %1095 = vmatpush1.msra.mxu0 0.0
      %1096 = vmatprep.subr.mxu0 0.0
      %1097 = vmatpush1.msra.mxu0 0.0
      %1098 = vmatprep.mubr.f32.mxu0 0.0
      %1099 = vmatmul.mubr.f32.gmra.mrb[0].mxu0 %v1032
      %v1100 = vpop.f32.mrb[0].mxu0
      %v1101 = vadd.f32 0.0, %v1100
      %v1102 = vpop.f32.mrb[0].mxu0
      %1103 = vdwg.mxu0
      %v1104 = vadd.f32 %v1026, %v1101
      %v1105 = vmul.f32 %v1104, %v1104
      %v1106 = vmul.f32 %v1104, %v1105
      %v1107 = vmul.f32 %v1106, 0.044715
      %v1108 = vadd.f32 %v1104, %v1107
      %v1109 = vmul.f32 %v1108, 0.7978846
      %v1110 = vtanh.pop %v1109
      %v1111 = vadd.f32 %v1110, 1.0
      %v1112 = vmul.f32 %v1111, 0.5
      %v1113 = vmul.f32 %v1104, %v1112
      %v1114 = vld [vmem:[%s9] sm:$0xff]
      %v1115 = vld [vmem:[%s9 + $0x8] sm:$0xff]
      %v1116 = vld [vmem:[%s9 + $0x10] sm:$0xff]
      %v1117 = vld [vmem:[%s9 + $0x18] sm:$0xff]
      %v1118 = vld [vmem:[%s9 + $0x20] sm:$0xff]
      %v1119 = vld [vmem:[%s9 + $0x28] sm:$0xff]
      %v1120 = vld [vmem:[%s9 + $0x30] sm:$0xff]
      %v1121 = vld [vmem:[%s9 + $0x38] sm:$0xff]
      %v1122 = vld [vmem:[%s10] sm:$0x1]
      %v1124 = vlaneseq
      %v1125 = vshrl.u32 %v1124, 7
      %v1126 = vsub.s32 0, %v1125
      %v1127 = vrot.slane %v1122, %v1126
      %vm1129 = vcmask 523264
      %v1131 = vsel %vm1129, %v1113, 0
      %1133 = vmatprep.subr.mxu0 0.0
      %1134 = vmatpush1.msra.mxu0 %v1114
      %1135 = vmatprep.subr.mxu0 0.0
      %1136 = vmatpush1.msra.mxu0 %v1115
      %1137 = vmatprep.subr.mxu0 0.0
      %1138 = vmatpush1.msra.mxu0 %v1116
      %1139 = vmatprep.subr.mxu0 0.0
      %1140 = vmatpush1.msra.mxu0 %v1117
      %1141 = vmatprep.subr.mxu0 0.0
      %1142 = vmatpush1.msra.mxu0 %v1118
      %1143 = vmatprep.subr.mxu0 0.0
      %1144 = vmatpush1.msra.mxu0 %v1119
      %1145 = vmatprep.subr.mxu0 0.0
      %1146 = vmatpush1.msra.mxu0 %v1120
      %1147 = vmatprep.subr.mxu0 0.0
      %1148 = vmatpush1.msra.mxu0 %v1121
      %1149 = vmatprep.subr.mxu0 0.0
      %1150 = vmatpush1.msra.mxu0 0.0
      %1151 = vmatprep.subr.mxu0 0.0
      %1152 = vmatpush1.msra.mxu0 0.0
      %1153 = vmatprep.subr.mxu0 0.0
      %1154 = vmatpush1.msra.mxu0 0.0
      %1155 = vmatprep.subr.mxu0 0.0
      %1156 = vmatpush1.msra.mxu0 0.0
      %1157 = vmatprep.subr.mxu0 0.0
      %1158 = vmatpush1.msra.mxu0 0.0
      %1159 = vmatprep.subr.mxu0 0.0
      %1160 = vmatpush1.msra.mxu0 0.0
      %1161 = vmatprep.subr.mxu0 0.0
      %1162 = vmatpush1.msra.mxu0 0.0
      %1163 = vmatprep.subr.mxu0 0.0
      %1164 = vmatpush1.msra.mxu0 0.0
      %1165 = vmatprep.subr.mxu0 0.0
      %1166 = vmatpush1.msra.mxu0 0.0
      %1167 = vmatprep.subr.mxu0 0.0
      %1168 = vmatpush1.msra.mxu0 0.0
      %1169 = vmatprep.subr.mxu0 0.0
      %1170 = vmatpush1.msra.mxu0 0.0
      %1171 = vmatprep.subr.mxu0 0.0
      %1172 = vmatpush1.msra.mxu0 0.0
      %1173 = vmatprep.subr.mxu0 0.0
      %1174 = vmatpush1.msra.mxu0 0.0
      %1175 = vmatprep.subr.mxu0 0.0
      %1176 = vmatpush1.msra.mxu0 0.0
      %1177 = vmatprep.subr.mxu0 0.0
      %1178 = vmatpush1.msra.mxu0 0.0
      %1179 = vmatprep.subr.mxu0 0.0
      %1180 = vmatpush1.msra.mxu0 0.0
      %1181 = vmatprep.subr.mxu0 0.0
      %1182 = vmatpush1.msra.mxu0 0.0
      %1183 = vmatprep.subr.mxu0 0.0
      %1184 = vmatpush1.msra.mxu0 0.0
      %1185 = vmatprep.subr.mxu0 0.0
      %1186 = vmatpush1.msra.mxu0 0.0
      %1187 = vmatprep.subr.mxu0 0.0
      %1188 = vmatpush1.msra.mxu0 0.0
      %1189 = vmatprep.subr.mxu0 0.0
      %1190 = vmatpush1.msra.mxu0 0.0
      %1191 = vmatprep.subr.mxu0 0.0
      %1192 = vmatpush1.msra.mxu0 0.0
      %1193 = vmatprep.subr.mxu0 0.0
      %1194 = vmatpush1.msra.mxu0 0.0
      %1195 = vmatprep.subr.mxu0 0.0
      %1196 = vmatpush1.msra.mxu0 0.0
      %1197 = vmatprep.mubr.f32.mxu0 0.0
      %1198 = vmatmul.mubr.f32.gmra.mrb[0].mxu0 %v1131
      %v1199 = vpop.f32.mrb[0].mxu0
      %v1200 = vadd.f32 %v1127, %v1199
      %v1201 = vpop.f32.mrb[0].mxu0
      %1202 = vdwg.mxu0
      %v1203 = vmul.f32 %v1200, %v1200
      %v1204 = vmul.f32 %v1200, %v1203
      %v1205 = vmul.f32 %v1204, 0.044715
      %v1206 = vadd.f32 %v1200, %v1205
      %v1207 = vmul.f32 %v1206, 0.7978846
      %v1208 = vtanh.pop %v1207
      %v1209 = vadd.f32 %v1208, 1.0
      %v1210 = vmul.f32 %v1209, 0.5
      %v1211 = vmul.f32 %v1200, %v1210
      %v1212 = vld [vmem:[%s11] sm:$0xff]
      %v1213 = vld [vmem:[%s11 + $0x8] sm:$0xff]
      %v1214 = vld [vmem:[%s11 + $0x10] sm:$0xff]
      %v1215 = vld [vmem:[%s11 + $0x18] sm:$0xff]
      %v1216 = vld [vmem:[%s11 + $0x20] sm:$0xff]
      %v1217 = vld [vmem:[%s11 + $0x28] sm:$0xff]
      %v1218 = vld [vmem:[%s11 + $0x30] sm:$0xff]
      %v1219 = vld [vmem:[%s11 + $0x38] sm:$0xff]
      %v1220 = vld [vmem:[%s12] sm:$0x1]
      %v1222 = vlaneseq
      %v1223 = vshrl.u32 %v1222, 7
      %v1224 = vsub.s32 0, %v1223
      %v1225 = vrot.slane %v1220, %v1224
      %v1228 = vsel %vm1129, %v1211, 0
      %1230 = vmatprep.subr.mxu0 0.0
      %1231 = vmatpush1.msra.mxu0 %v1212
      %1232 = vmatprep.subr.mxu0 0.0
      %1233 = vmatpush1.msra.mxu0 %v1213
      %1234 = vmatprep.subr.mxu0 0.0
      %1235 = vmatpush1.msra.mxu0 %v1214
      %1236 = vmatprep.subr.mxu0 0.0
      %1237 = vmatpush1.msra.mxu0 %v1215
      %1238 = vmatprep.subr.mxu0 0.0
      %1239 = vmatpush1.msra.mxu0 %v1216
      %1240 = vmatprep.subr.mxu0 0.0
      %1241 = vmatpush1.msra.mxu0 %v1217
      %1242 = vmatprep.subr.mxu0 0.0
      %1243 = vmatpush1.msra.mxu0 %v1218
      %1244 = vmatprep.subr.mxu0 0.0
      %1245 = vmatpush1.msra.mxu0 %v1219
      %1246 = vmatprep.subr.mxu0 0.0
      %1247 = vmatpush1.msra.mxu0 0.0
      %1248 = vmatprep.subr.mxu0 0.0
      %1249 = vmatpush1.msra.mxu0 0.0
      %1250 = vmatprep.subr.mxu0 0.0
      %1251 = vmatpush1.msra.mxu0 0.0
      %1252 = vmatprep.subr.mxu0 0.0
      %1253 = vmatpush1.msra.mxu0 0.0
      %1254 = vmatprep.subr.mxu0 0.0
      %1255 = vmatpush1.msra.mxu0 0.0
      %1256 = vmatprep.subr.mxu0 0.0
      %1257 = vmatpush1.msra.mxu0 0.0
      %1258 = vmatprep.subr.mxu0 0.0
      %1259 = vmatpush1.msra.mxu0 0.0
      %1260 = vmatprep.subr.mxu0 0.0
      %1261 = vmatpush1.msra.mxu0 0.0
      %1262 = vmatprep.subr.mxu0 0.0
      %1263 = vmatpush1.msra.mxu0 0.0
      %1264 = vmatprep.subr.mxu0 0.0
      %1265 = vmatpush1.msra.mxu0 0.0
      %1266 = vmatprep.subr.mxu0 0.0
      %1267 = vmatpush1.msra.mxu0 0.0
      %1268 = vmatprep.subr.mxu0 0.0
      %1269 = vmatpush1.msra.mxu0 0.0
      %1270 = vmatprep.subr.mxu0 0.0
      %1271 = vmatpush1.msra.mxu0 0.0
      %1272 = vmatprep.subr.mxu0 0.0
      %1273 = vmatpush1.msra.mxu0 0.0
      %1274 = vmatprep.subr.mxu0 0.0
      %1275 = vmatpush1.msra.mxu0 0.0
      %1276 = vmatprep.subr.mxu0 0.0
      %1277 = vmatpush1.msra.mxu0 0.0
      %1278 = vmatprep.subr.mxu0 0.0
      %1279 = vmatpush1.msra.mxu0 0.0
      %1280 = vmatprep.subr.mxu0 0.0
      %1281 = vmatpush1.msra.mxu0 0.0
      %1282 = vmatprep.subr.mxu0 0.0
      %1283 = vmatpush1.msra.mxu0 0.0
      %1284 = vmatprep.subr.mxu0 0.0
      %1285 = vmatpush1.msra.mxu0 0.0
      %1286 = vmatprep.subr.mxu0 0.0
      %1287 = vmatpush1.msra.mxu0 0.0
      %1288 = vmatprep.subr.mxu0 0.0
      %1289 = vmatpush1.msra.mxu0 0.0
      %1290 = vmatprep.subr.mxu0 0.0
      %1291 = vmatpush1.msra.mxu0 0.0
      %1292 = vmatprep.subr.mxu0 0.0
      %1293 = vmatpush1.msra.mxu0 0.0
      %1294 = vmatprep.mubr.f32.mxu0 0.0
      %1295 = vmatmul.mubr.f32.gmra.mrb[0].mxu0 %v1228
      %v1296 = vpop.f32.mrb[0].mxu0
      %v1297 = vadd.f32 %v1225, %v1296
      %v1298 = vpop.f32.mrb[0].mxu0
      %1299 = vdwg.mxu0
      %v1300 = vld [vmem:[%s13] sm:$0x1]
      %v1301 = vld [vmem:[%s14] sm:$0x1]
      %vm1302 = vcmask 261120
      %v1303 = vsel %vm1302, %v1297, 0.0
      %1304 = vadd.xlane.f32.xlu0 %v1303
      %v1305 = vpop.xlane.xlu0 %1304
      %v1306 = vrcp.pop 32.0
      %v1307 = vmul.f32 %v1305, %v1306
      %v1308 = vsub.f32 %v1297, %v1307
      %v1309 = vmul.f32 %v1308, %v1308
      %v1310 = vsel %vm1302, %v1309, 0.0
      %1311 = vadd.xlane.f32.xlu0 %v1310
      %v1312 = vpop.xlane.xlu0 %1311
      %v1313 = vmul.f32 %v1312, %v1306
      %v1314 = vadd.f32 %v1313, 1e-05
      %v1315 = vrsqrt.pop %v1314
      %v1316 = vmul.f32 %v1308, %v1315
      %v1318 = vlaneseq
      %v1319 = vshrl.u32 %v1318, 7
      %v1320 = vsub.s32 0, %v1319
      %v1321 = vrot.slane %v1300, %v1320
      %v1323 = vmul.f32 %v1316, %v1321
      %v1325 = vlaneseq
      %v1326 = vshrl.u32 %v1325, 7
      %v1327 = vsub.s32 0, %v1326
      %v1328 = vrot.slane %v1301, %v1327
      %v1330 = vadd.f32 %v1323, %v1328
      %v1331 = vld [vmem:[%s15] sm:$0xff]
      %v1332 = vld [vmem:[%s15 + $0x8] sm:$0xff]
      %v1333 = vld [vmem:[%s15 + $0x10] sm:$0xff]
      %v1334 = vld [vmem:[%s15 + $0x18] sm:$0xff]
      %v1335 = vld [vmem:[%s16] sm:$0x1]
      %v1337 = vlaneseq
      %v1338 = vshrl.u32 %v1337, 7
      %v1339 = vsub.s32 0, %v1338
      %v1340 = vrot.slane %v1335, %v1339
      %v1343 = vsel %vm1302, %v1330, 0
      %1345 = vmatprep.subr.mxu0 0.0
      %1346 = vmatpush1.msra.mxu0 %v1331
      %1347 = vmatprep.subr.mxu0 0.0
      %1348 = vmatpush1.msra.mxu0 %v1332
      %1349 = vmatprep.subr.mxu0 0.0
      %1350 = vmatpush1.msra.mxu0 %v1333
      %1351 = vmatprep.subr.mxu0 0.0
      %1352 = vmatpush1.msra.mxu0 %v1334
      %1353 = vmatprep.subr.mxu0 0.0
      %1354 = vmatpush1.msra.mxu0 0.0
      %1355 = vmatprep.subr.mxu0 0.0
      %1356 = vmatpush1.msra.mxu0 0.0
      %1357 = vmatprep.subr.mxu0 0.0
      %1358 = vmatpush1.msra.mxu0 0.0
      %1359 = vmatprep.subr.mxu0 0.0
      %1360 = vmatpush1.msra.mxu0 0.0
      %1361 = vmatprep.subr.mxu0 0.0
      %1362 = vmatpush1.msra.mxu0 0.0
      %1363 = vmatprep.subr.mxu0 0.0
      %1364 = vmatpush1.msra.mxu0 0.0
      %1365 = vmatprep.subr.mxu0 0.0
      %1366 = vmatpush1.msra.mxu0 0.0
      %1367 = vmatprep.subr.mxu0 0.0
      %1368 = vmatpush1.msra.mxu0 0.0
      %1369 = vmatprep.subr.mxu0 0.0
      %1370 = vmatpush1.msra.mxu0 0.0
      %1371 = vmatprep.subr.mxu0 0.0
      %1372 = vmatpush1.msra.mxu0 0.0
      %1373 = vmatprep.subr.mxu0 0.0
      %1374 = vmatpush1.msra.mxu0 0.0
      %1375 = vmatprep.subr.mxu0 0.0
      %1376 = vmatpush1.msra.mxu0 0.0
      %1377 = vmatprep.subr.mxu0 0.0
      %1378 = vmatpush1.msra.mxu0 0.0
      %1379 = vmatprep.subr.mxu0 0.0
      %1380 = vmatpush1.msra.mxu0 0.0
      %1381 = vmatprep.subr.mxu0 0.0
      %1382 = vmatpush1.msra.mxu0 0.0
      %1383 = vmatprep.subr.mxu0 0.0
      %1384 = vmatpush1.msra.mxu0 0.0
      %1385 = vmatprep.subr.mxu0 0.0
      %1386 = vmatpush1.msra.mxu0 0.0
      %1387 = vmatprep.subr.mxu0 0.0
      %1388 = vmatpush1.msra.mxu0 0.0
      %1389 = vmatprep.subr.mxu0 0.0
      %1390 = vmatpush1.msra.mxu0 0.0
      %1391 = vmatprep.subr.mxu0 0.0
      %1392 = vmatpush1.msra.mxu0 0.0
      %1393 = vmatprep.subr.mxu0 0.0
      %1394 = vmatpush1.msra.mxu0 0.0
      %1395 = vmatprep.subr.mxu0 0.0
      %1396 = vmatpush1.msra.mxu0 0.0
      %1397 = vmatprep.subr.mxu0 0.0
      %1398 = vmatpush1.msra.mxu0 0.0
      %1399 = vmatprep.subr.mxu0 0.0
      %1400 = vmatpush1.msra.mxu0 0.0
      %1401 = vmatprep.subr.mxu0 0.0
      %1402 = vmatpush1.msra.mxu0 0.0
      %1403 = vmatprep.subr.mxu0 0.0
      %1404 = vmatpush1.msra.mxu0 0.0
      %1405 = vmatprep.subr.mxu0 0.0
      %1406 = vmatpush1.msra.mxu0 0.0
      %1407 = vmatprep.subr.mxu0 0.0
      %1408 = vmatpush1.msra.mxu0 0.0
      %1409 = vmatprep.mubr.f32.mxu0 0.0
      %1410 = vmatmul.mubr.f32.gmra.mrb[0].mxu0 %v1343
      %v1411 = vpop.f32.mrb[0].mxu0
      %v1412 = vadd.f32 %v1340, %v1411
      %v1413 = vpop.f32.mrb[0].mxu0
      %1414 = vdwg.mxu0
      %v1415 = vmul.f32 %v1412, %v1412
      %v1416 = vmul.f32 %v1412, %v1415
      %v1417 = vmul.f32 %v1416, 0.044715
      %v1418 = vadd.f32 %v1412, %v1417
      %v1419 = vmul.f32 %v1418, 0.7978846
      %v1420 = vtanh.pop %v1419
      %v1421 = vadd.f32 %v1420, 1.0
      %v1422 = vmul.f32 %v1421, 0.5
      %v1423 = vmul.f32 %v1412, %v1422
      %v1424 = vld [vmem:[%s17] sm:$0xff]
      %v1425 = vld [vmem:[%s17 + $0x8] sm:$0xff]
      %v1426 = vld [vmem:[%s17 + $0x10] sm:$0xff]
      %v1427 = vld [vmem:[%s17 + $0x18] sm:$0xff]
      %v1428 = vld [vmem:[%s17 + $0x20] sm:$0xff]
      %v1429 = vld [vmem:[%s17 + $0x28] sm:$0xff]
      %v1430 = vld [vmem:[%s17 + $0x30] sm:$0xff]
      %v1431 = vld [vmem:[%s17 + $0x38] sm:$0xff]
      %v1432 = vld [vmem:[%s18] sm:$0x1]
      %v1434 = vlaneseq
      %v1435 = vshrl.u32 %v1434, 7
      %v1436 = vsub.s32 0, %v1435
      %v1437 = vrot.slane %v1432, %v1436
      %v1440 = vsel %vm1129, %v1423, 0
      %1442 = vmatprep.subr.mxu0 0.0
      %1443 = vmatpush1.msra.mxu0 %v1424
      %1444 = vmatprep.subr.mxu0 0.0
      %1445 = vmatpush1.msra.mxu0 %v1425
      %1446 = vmatprep.subr.mxu0 0.0
      %1447 = vmatpush1.msra.mxu0 %v1426
      %1448 = vmatprep.subr.mxu0 0.0
      %1449 = vmatpush1.msra.mxu0 %v1427
      %1450 = vmatprep.subr.mxu0 0.0
      %1451 = vmatpush1.msra.mxu0 %v1428
      %1452 = vmatprep.subr.mxu0 0.0
      %1453 = vmatpush1.msra.mxu0 %v1429
      %1454 = vmatprep.subr.mxu0 0.0
      %1455 = vmatpush1.msra.mxu0 %v1430
      %1456 = vmatprep.subr.mxu0 0.0
      %1457 = vmatpush1.msra.mxu0 %v1431
      %1458 = vmatprep.subr.mxu0 0.0
      %1459 = vmatpush1.msra.mxu0 0.0
      %1460 = vmatprep.subr.mxu0 0.0
      %1461 = vmatpush1.msra.mxu0 0.0
      %1462 = vmatprep.subr.mxu0 0.0
      %1463 = vmatpush1.msra.mxu0 0.0
      %1464 = vmatprep.subr.mxu0 0.0
      %1465 = vmatpush1.msra.mxu0 0.0
      %1466 = vmatprep.subr.mxu0 0.0
      %1467 = vmatpush1.msra.mxu0 0.0
      %1468 = vmatprep.subr.mxu0 0.0
      %1469 = vmatpush1.msra.mxu0 0.0
      %1470 = vmatprep.subr.mxu0 0.0
      %1471 = vmatpush1.msra.mxu0 0.0
      %1472 = vmatprep.subr.mxu0 0.0
      %1473 = vmatpush1.msra.mxu0 0.0
      %1474 = vmatprep.subr.mxu0 0.0
      %1475 = vmatpush1.msra.mxu0 0.0
      %1476 = vmatprep.subr.mxu0 0.0
      %1477 = vmatpush1.msra.mxu0 0.0
      %1478 = vmatprep.subr.mxu0 0.0
      %1479 = vmatpush1.msra.mxu0 0.0
      %1480 = vmatprep.subr.mxu0 0.0
      %1481 = vmatpush1.msra.mxu0 0.0
      %1482 = vmatprep.subr.mxu0 0.0
      %1483 = vmatpush1.msra.mxu0 0.0
      %1484 = vmatprep.subr.mxu0 0.0
      %1485 = vmatpush1.msra.mxu0 0.0
      %1486 = vmatprep.subr.mxu0 0.0
      %1487 = vmatpush1.msra.mxu0 0.0
      %1488 = vmatprep.subr.mxu0 0.0
      %1489 = vmatpush1.msra.mxu0 0.0
      %1490 = vmatprep.subr.mxu0 0.0
      %1491 = vmatpush1.msra.mxu0 0.0
      %1492 = vmatprep.subr.mxu0 0.0
      %1493 = vmatpush1.msra.mxu0 0.0
      %1494 = vmatprep.subr.mxu0 0.0
      %1495 = vmatpush1.msra.mxu0 0.0
      %1496 = vmatprep.subr.mxu0 0.0
      %1497 = vmatpush1.msra.mxu0 0.0
      %1498 = vmatprep.subr.mxu0 0.0
      %1499 = vmatpush1.msra.mxu0 0.0
      %1500 = vmatprep.subr.mxu0 0.0
      %1501 = vmatpush1.msra.mxu0 0.0
      %1502 = vmatprep.subr.mxu0 0.0
      %1503 = vmatpush1.msra.mxu0 0.0
      %1504 = vmatprep.subr.mxu0 0.0
      %1505 = vmatpush1.msra.mxu0 0.0
      %1506 = vmatprep.mubr.f32.mxu0 0.0
      %1507 = vmatmul.mubr.f32.gmra.mrb[0].mxu0 %v1440
      %v1508 = vpop.f32.mrb[0].mxu0
      %v1509 = vadd.f32 %v1437, %v1508
      %v1510 = vpop.f32.mrb[0].mxu0
      %1511 = vdwg.mxu0
      %v1512 = vld [vmem:[%s19] sm:$0x1]
      %v1513 = vld [vmem:[%s20] sm:$0x1]
      %v1514 = vsel %vm853, %v1509, 0.0
      %1515 = vadd.xlane.f32.xlu0 %v1514
      %v1516 = vpop.xlane.xlu0 %1515
      %v1517 = vrcp.pop 16.0
      %v1518 = vmul.f32 %v1516, %v1517
      %v1519 = vsub.f32 %v1509, %v1518
      %v1520 = vmul.f32 %v1519, %v1519
      %v1521 = vsel %vm853, %v1520, 0.0
      %1522 = vadd.xlane.f32.xlu0 %v1521
      %v1523 = vpop.xlane.xlu0 %1522
      %v1524 = vmul.f32 %v1523, %v1517
      %v1525 = vadd.f32 %v1524, 1e-05
      %v1526 = vrsqrt.pop %v1525
      %v1527 = vmul.f32 %v1519, %v1526
      %v1529 = vlaneseq
      %v1530 = vshrl.u32 %v1529, 7
      %v1531 = vsub.s32 0, %v1530
      %v1532 = vrot.slane %v1512, %v1531
      %v1534 = vmul.f32 %v1527, %v1532
      %v1536 = vlaneseq
      %v1537 = vshrl.u32 %v1536, 7
      %v1538 = vsub.s32 0, %v1537
      %v1539 = vrot.slane %v1513, %v1538
      %v1541 = vadd.f32 %v1534, %v1539
      %1543 = vrot.lane.b32.xlu0 %v1541, 32
      %v1544 = vpop.permute.xlu0 %1543
      %v1546 = vsel %vm1302, %v1330, %v1544
      %vm1547 = vcmask 392192
      %v1548 = vsel %vm1547, %v1546, 0.0
      %1549 = vst [vmem:[%s702] sm:$0xff] %v1548
      %p1550 = scmp.lt.s32.totalorder %s32, 1
      %s1551 = scalar_select %p1550, %s32, 1
      %s1552 = smul.addr %s1551, 8
      %s1553 = scalar_lea.vmem %s21, %s1552
      // Predicated region
      $region105: #{tv_encoder_apply.1} parent=103 // pred_check
        %p1554 = pneg %p511
      $region106: #{tv_encoder_apply.1} parent=103 // pred_check_branch
        %1556 = sbr.rel (%p1554) target = $region108
      $region107: #{tv_encoder_apply.1} parent=103 // pred_region
        _
      $region108: #{tv_encoder_apply.1} parent=103 // pred_fallthru
        _
    $region104: #{tv_encoder_apply.1} parent=5 // pred_fallthru
      _
    %p1557 = scmp.le.s32.totalorder 2, %s27
    // Predicated region
    $region109: #{tv_encoder_apply.1} parent=5 // pred_check
      %p1558 = pneg %p1557
    $region110: #{tv_encoder_apply.1} parent=5 // pred_check_branch
      %1560 = sbr.rel (%p1558) target = $region112
    $region111: #{tv_encoder_apply.1} parent=5 // pred_region
      %s1561 = ssub.s32 %s27, 2
      // Predicated region
      $region113: #{tv_encoder_apply.1} parent=111 // pred_check
        %p1562 = pneg %p517
      $region114: #{tv_encoder_apply.1} parent=111 // pred_check_branch
        %1564 = sbr.rel (%p1562) target = $region116
      $region115: #{tv_encoder_apply.1} parent=111 // pred_region
        %p1565 = scmp.lt.s32.totalorder %s33, 1
        %s1566 = scalar_select %p1565, %s33, 1
        %s1567 = smul.addr %s1566, 8
        %s1568 = scalar_lea.vmem %s21, %s1567
      $region116: #{tv_encoder_apply.1} parent=111 // pred_fallthru
        _
    $region112: #{tv_encoder_apply.1} parent=5 // pred_fallthru
      _
  $region6: #{tv_encoder_apply.1} parent=0 // loop_footer
    %s31 = sadd.s32 1, %s27
  $region7: #{tv_encoder_apply.1} parent=0 // loop_footer_branch
    %26 = sbr.rel target = $region3
  $region8: #{tv_encoder_apply.1} parent=0 // loop_exit
    _

</llo_original>
